<compile_context>
chip_gen: v5e
topology: v5e:2x2
jax: 0.10.0
libtpu: 0.0.40
codegen_flags: <defaults>
</compile_context>

<pallas_src>
import functools

import jax
import jax.numpy as jnp
from jax.experimental import pallas as pl
from jax.experimental.pallas import tpu as pltpu

NEG_SLOPE = 0.01      # PyTorch F.leaky_relu default negative_slope
LANE = 128
NEG_BIG = -1e30       # softmax padding logit: exp(NEG_BIG - max) == 0 in f32
NUM_CHUNKS = 2        # independent row sub-chunks per grid step (MXU/VPU ILP)


def _round_up(x, m):
    return ((x + m - 1) // m) * m


def _leaky_relu(v):
    return jnp.where(v > 0, v, NEG_SLOPE * v)


def _layer(h_in, w, b, *, bf16_epilogue):
    """One hidden layer: bf16 MXU matmul (f32 accumulate) + bias + leaky_relu."""
    acc = jnp.dot(h_in.astype(jnp.bfloat16), w,
                  preferred_element_type=jnp.float32)
    if bf16_epilogue:
        # bias/leaky in bf16 (b is bf16): ~halves VALU work on v6e/v7x.
        return _leaky_relu(acc.astype(jnp.bfloat16) + b)
    # f32 epilogue (v5e has no bf16 VPU); b is f32.
    return _leaky_relu(acc + b)


def fcn_kernel(x_ref,
               w1_ref, b1_ref, w2_ref, b2_ref,
               w3_ref, b3_ref, w4_ref, b4_ref,
               o_ref, *, bf16_epilogue, num_chunks):
    rows = x_ref.shape[0]
    sub = rows // num_chunks

    # Resident weights/biases: loaded once, reused by every sub-chunk.
    w1, b1 = w1_ref[...], b1_ref[...]
    w2, b2 = w2_ref[...], b2_ref[...]
    w3, b3 = w3_ref[...], b3_ref[...]
    w4, b4 = w4_ref[...], b4_ref[...]

    # Two independent row sub-chunks in the same basic block: the serial
    # 4-layer chain otherwise leaves the MXU idle during every leaky_relu /
    # softmax, so the second chunk gives the LLO scheduler real ILP.
    for c in range(num_chunks):
        lo = c * sub                                   # static, sublane-aligned
        x = x_ref[lo:lo + sub, :]                      # f32 -> bf16 cast below

        h = _layer(x, w1, b1, bf16_epilogue=bf16_epilogue)
        h = _layer(h, w2, b2, bf16_epilogue=bf16_epilogue)
        h = _layer(h, w3, b3, bf16_epilogue=bf16_epilogue)

        # Layer 4 + softmax stay in f32 (padding bias is -1e30; exp -> 0).
        h4 = jnp.dot(h.astype(jnp.bfloat16), w4,
                     preferred_element_type=jnp.float32) + b4
        h4 = _leaky_relu(h4)

        m = jnp.max(h4, axis=-1, keepdims=True)
        e = jnp.exp(h4 - m)
        denom = jnp.sum(e, axis=-1, keepdims=True)
        p = e * pl.reciprocal(denom, approx=True)      # EUP slot, ~2^-12 rel err
        o_ref[lo:lo + sub, :] = p.astype(o_ref.dtype)  # lane-dense bf16 store


def _default_bf16_epilogue():
    # bf16 VPU epilogues only pay off on v6e / v7x; v5e lacks a bf16 VALU.
    try:
        kind = jax.devices()[0].device_kind.lower()
    except Exception:
        return False
    return ("v6" in kind) or ("v7" in kind)


@functools.partial(jax.jit, static_argnames=("block_b", "bf16_epilogue"))
def fcn_for_encoder(x, params, *, block_b=None, bf16_epilogue=None):
    """x: [B, dim_in] f32; params: f32 weights [in, out] / biases [1, out]."""
    if bf16_epilogue is None:
        bf16_epilogue = _default_bf16_epilogue()

    B, dim_in = x.shape
    dim_out = params["w4"].shape[1]
    h3 = params["w3"].shape[1]                            # 64 in the module
    h3_pad = int(_round_up(max(h3, LANE), LANE))          # lane-dense h3
    dout_pad = int(_round_up(max(dim_out, LANE), LANE))   # lane-dense output

    # Batch tile: big tiles amortize the ~0.35 us/step pipeline overhead.
    # 2048 rows of double-buffered f32-in / bf16-out tiles + resident bf16
    # weights (~0.16 MiB) + live intermediates stay well under 32 MiB.
    if block_b is None:
        block_b = 2048
    block_b = int(min(_round_up(block_b, 8 * NUM_CHUNKS),
                      _round_up(B, 8 * NUM_CHUNKS)))
    b_pad = int(_round_up(B, block_b))
    grid = (b_pad // block_b,)

    # x streams in f32; the bf16 cast happens in-register inside the kernel.
    xp = x if b_pad == B else jnp.pad(x, ((0, b_pad - B), (0, 0)))

    ep_dt = jnp.bfloat16 if bf16_epilogue else jnp.float32

    w1 = params["w1"].astype(jnp.bfloat16)
    w2 = params["w2"].astype(jnp.bfloat16)
    # Pad layer-3 output 64 -> 128 so h3 is lane-dense (zero cols / zero bias).
    w3 = jnp.pad(params["w3"], ((0, 0), (0, h3_pad - h3))).astype(jnp.bfloat16)
    # Layer-4: zero input rows (match padded h3) and zero output cols.
    w4 = jnp.pad(params["w4"],
                 ((0, h3_pad - h3), (0, dout_pad - dim_out))).astype(jnp.bfloat16)

    b1 = params["b1"].astype(ep_dt)
    b2 = params["b2"].astype(ep_dt)
    b3 = jnp.pad(params["b3"], ((0, 0), (0, h3_pad - h3))).astype(ep_dt)
    # Layer 4 / softmax stay f32; padded cols get -1e30 so exp() == 0 exactly.
    b4 = jnp.pad(params["b4"].astype(jnp.float32),
                 ((0, 0), (0, dout_pad - dim_out)), constant_values=NEG_BIG)

    def resident(shape):
        # Same block every step -> stays in VMEM, never re-DMA'd.
        return pl.BlockSpec(shape, lambda i: (0, 0))

    kernel = functools.partial(fcn_kernel,
                               bf16_epilogue=bf16_epilogue,
                               num_chunks=NUM_CHUNKS)

    out = pl.pallas_call(
        kernel,
        # bf16 lane-dense output: unmasked full-width stores, half the HBM
        # writeback of the previous padded-f32 tile (the dominant stream).
        out_shape=jax.ShapeDtypeStruct((b_pad, dout_pad), jnp.bfloat16),
        grid=grid,
        in_specs=[
            pl.BlockSpec((block_b, dim_in), lambda i: (i, 0)),   # x stream
            resident(w1.shape), resident(b1.shape),
            resident(w2.shape), resident(b2.shape),
            resident(w3.shape), resident(b3.shape),
            resident(w4.shape), resident(b4.shape),
        ],
        out_specs=pl.BlockSpec((block_b, dout_pad), lambda i: (i, 0)),
        compiler_params=pltpu.CompilerParams(
            dimension_semantics=("parallel",),        # batch steps independent
            vmem_limit_bytes=32 * 1024 * 1024),       # headroom for 2048-row tiles
    )(xp, w1, b1, w2, b2, w3, b3, w4, b4)

    # Slice real columns and return f32 (matches the PyTorch module's output).
    return out[:B, :dim_out].astype(jnp.float32)


def init_params(key, dim_in, dim_out=2):
    """Deterministic init mimicking nn.Linear's U(-1/sqrt(fan_in), 1/sqrt(fan_in))."""
    dims = [dim_in, 256, 128, 64, dim_out]
    params = {}
    keys = jax.random.split(key, 8)
    for i in range(4):
        fan_in, fan_out = dims[i], dims[i + 1]
        bound = 1.0 / jnp.sqrt(jnp.float32(fan_in))
        params[f"w{i + 1}"] = jax.random.uniform(
            keys[2 * i], (fan_in, fan_out),
            minval=-bound, maxval=bound, dtype=jnp.float32)
        params[f"b{i + 1}"] = jax.random.uniform(
            keys[2 * i + 1], (1, fan_out),
            minval=-bound, maxval=bound, dtype=jnp.float32)
    return params


def reference_forward(x, params, *, bf16_epilogue):
    """Pure-JAX reference mirroring the kernel's numeric path."""
    h = x
    for i in range(1, 5):
        w = params[f"w{i}"].astype(jnp.bfloat16)
        acc = jnp.dot(h.astype(jnp.bfloat16), w,
                      preferred_element_type=jnp.float32)
        if i < 4 and bf16_epilogue:
            h = _leaky_relu(acc.astype(jnp.bfloat16)
                            + params[f"b{i}"].astype(jnp.bfloat16))
        else:
            h = _leaky_relu(acc + params[f"b{i}"].astype(jnp.float32))
    p = jax.nn.softmax(h.astype(jnp.float32), axis=-1)
    # Mirror the kernel's bf16 output quantization.
    return p.astype(jnp.bfloat16).astype(jnp.float32)


if __name__ == "__main__":
    key = jax.random.PRNGKey(0)
    k_x, k_p = jax.random.split(key)

    batch, dim_in, dim_out = 300, 64, 2
    x = jax.random.normal(k_x, (batch, dim_in), dtype=jnp.float32)
    params = init_params(k_p, dim_in, dim_out)

    bf16_ep = _default_bf16_epilogue()
    ref = reference_forward(x, params, bf16_epilogue=bf16_ep)

    # Default path: single large batch tile (grid of 1 for this small batch).
    out = jax.block_until_ready(fcn_for_encoder(x, params, bf16_epilogue=bf16_ep))
    assert out.shape == (batch, dim_out), out.shape
    assert jnp.allclose(out, ref, atol=4e-3, rtol=4e-3), (out[:4], ref[:4])
    assert jnp.allclose(jnp.sum(out, axis=-1), jnp.ones((batch,)), atol=5e-3)

    # Small explicit tile: exercises the multi-step grid + batch-padding path.
    out_tiled = jax.block_until_ready(
        fcn_for_encoder(x, params, block_b=128, bf16_epilogue=bf16_ep))
    assert out_tiled.shape == (batch, dim_out), out_tiled.shape
    assert jnp.allclose(out_tiled, ref, atol=4e-3, rtol=4e-3)

    print("KERNEL_OK")
</pallas_src>

<mosaic_0001>
module attributes {stable_mosaic.version = 11 : i64} {
  func.func @fcn_kernel(%arg0: i32, %arg1: memref<304x64xf32, #tpu.memory_space<vmem>>, %arg2: memref<64x256xbf16, #tpu.memory_space<vmem>>, %arg3: memref<1x256xf32, #tpu.memory_space<vmem>>, %arg4: memref<256x128xbf16, #tpu.memory_space<vmem>>, %arg5: memref<1x128xf32, #tpu.memory_space<vmem>>, %arg6: memref<128x128xbf16, #tpu.memory_space<vmem>>, %arg7: memref<1x128xf32, #tpu.memory_space<vmem>>, %arg8: memref<128x128xbf16, #tpu.memory_space<vmem>>, %arg9: memref<1x128xf32, #tpu.memory_space<vmem>>, %arg10: memref<304x128xbf16, #tpu.memory_space<vmem>>) attributes {dimension_semantics = [#tpu.dimension_semantics<parallel>], iteration_bounds = array<i64: 1>, scalar_prefetch = 0 : i64, scratch_operands = 0 : i64, tpu.core_type = #tpu.core_type<tc>, window_params = [{transform_indices = @transform_0, window_bounds = array<i64: 304, 64>}, {pipeline_mode = #tpu.pipeline_mode<synchronous>, transform_indices = @transform_1, window_bounds = array<i64: 64, 256>}, {pipeline_mode = #tpu.pipeline_mode<synchronous>, transform_indices = @transform_2, window_bounds = array<i64: 1, 256>}, {pipeline_mode = #tpu.pipeline_mode<synchronous>, transform_indices = @transform_3, window_bounds = array<i64: 256, 128>}, {pipeline_mode = #tpu.pipeline_mode<synchronous>, transform_indices = @transform_4, window_bounds = array<i64: 1, 128>}, {pipeline_mode = #tpu.pipeline_mode<synchronous>, transform_indices = @transform_5, window_bounds = array<i64: 128, 128>}, {pipeline_mode = #tpu.pipeline_mode<synchronous>, transform_indices = @transform_6, window_bounds = array<i64: 1, 128>}, {pipeline_mode = #tpu.pipeline_mode<synchronous>, transform_indices = @transform_7, window_bounds = array<i64: 128, 128>}, {pipeline_mode = #tpu.pipeline_mode<synchronous>, transform_indices = @transform_8, window_bounds = array<i64: 1, 128>}, {transform_indices = @transform_9, window_bounds = array<i64: 304, 128>}]} {
    %c0 = arith.constant 0 : index
    %c0_0 = arith.constant 0 : index
    %0 = vector.load %arg2[%c0, %c0_0] : memref<64x256xbf16, #tpu.memory_space<vmem>>, vector<64x256xbf16>
    %c0_1 = arith.constant 0 : index
    %c0_2 = arith.constant 0 : index
    %1 = vector.load %arg3[%c0_1, %c0_2] : memref<1x256xf32, #tpu.memory_space<vmem>>, vector<1x256xf32>
    %c0_3 = arith.constant 0 : index
    %c0_4 = arith.constant 0 : index
    %2 = vector.load %arg4[%c0_3, %c0_4] : memref<256x128xbf16, #tpu.memory_space<vmem>>, vector<256x128xbf16>
    %c0_5 = arith.constant 0 : index
    %c0_6 = arith.constant 0 : index
    %3 = vector.load %arg5[%c0_5, %c0_6] : memref<1x128xf32, #tpu.memory_space<vmem>>, vector<1x128xf32>
    %c0_7 = arith.constant 0 : index
    %c0_8 = arith.constant 0 : index
    %4 = vector.load %arg6[%c0_7, %c0_8] : memref<128x128xbf16, #tpu.memory_space<vmem>>, vector<128x128xbf16>
    %c0_9 = arith.constant 0 : index
    %c0_10 = arith.constant 0 : index
    %5 = vector.load %arg7[%c0_9, %c0_10] : memref<1x128xf32, #tpu.memory_space<vmem>>, vector<1x128xf32>
    %c0_11 = arith.constant 0 : index
    %c0_12 = arith.constant 0 : index
    %6 = vector.load %arg8[%c0_11, %c0_12] : memref<128x128xbf16, #tpu.memory_space<vmem>>, vector<128x128xbf16>
    %c0_13 = arith.constant 0 : index
    %c0_14 = arith.constant 0 : index
    %7 = vector.load %arg9[%c0_13, %c0_14] : memref<1x128xf32, #tpu.memory_space<vmem>>, vector<1x128xf32>
    %c0_15 = arith.constant 0 : index
    %c0_16 = arith.constant 0 : index
    %8 = vector.load %arg1[%c0_15, %c0_16] : memref<304x64xf32, #tpu.memory_space<vmem>>, vector<152x64xf32>
    %9 = arith.truncf %8 : vector<152x64xf32> to vector<152x64xbf16>
    %cst = arith.constant dense<0.000000e+00> : vector<152x256xf32>
    %10 = tpu.matmul %9, %0, %cst {dimension_numbers = #tpu.dot_dimension_numbers<[1], [0], [0], [1], [0, 0, 1, 1], [], []>} : vector<152x64xbf16>, vector<64x256xbf16>, vector<152x256xf32> -> vector<152x256xf32>
    %11 = vector.broadcast %1 : vector<1x256xf32> to vector<152x256xf32>
    %12 = arith.addf %10, %11 : vector<152x256xf32>
    %cst_17 = arith.constant 0.000000e+00 : f32
    %13 = vector.broadcast %cst_17 : f32 to vector<152x256xf32>
    %14 = arith.cmpf ogt, %12, %13 : vector<152x256xf32>
    %cst_18 = arith.constant 0.00999999977 : f32
    %15 = vector.broadcast %cst_18 : f32 to vector<152x256xf32>
    %16 = arith.mulf %15, %12 : vector<152x256xf32>
    %17 = arith.select %14, %12, %16 : vector<152x256xi1>, vector<152x256xf32>
    %18 = arith.truncf %17 : vector<152x256xf32> to vector<152x256xbf16>
    %cst_19 = arith.constant dense<0.000000e+00> : vector<152x128xf32>
    %19 = tpu.matmul %18, %2, %cst_19 {dimension_numbers = #tpu.dot_dimension_numbers<[1], [0], [0], [1], [0, 0, 1, 1], [], []>} : vector<152x256xbf16>, vector<256x128xbf16>, vector<152x128xf32> -> vector<152x128xf32>
    %20 = vector.broadcast %3 : vector<1x128xf32> to vector<152x128xf32>
    %21 = arith.addf %19, %20 : vector<152x128xf32>
    %cst_20 = arith.constant 0.000000e+00 : f32
    %22 = vector.broadcast %cst_20 : f32 to vector<152x128xf32>
    %23 = arith.cmpf ogt, %21, %22 : vector<152x128xf32>
    %cst_21 = arith.constant 0.00999999977 : f32
    %24 = vector.broadcast %cst_21 : f32 to vector<152x128xf32>
    %25 = arith.mulf %24, %21 : vector<152x128xf32>
    %26 = arith.select %23, %21, %25 : vector<152x128xi1>, vector<152x128xf32>
    %27 = arith.truncf %26 : vector<152x128xf32> to vector<152x128xbf16>
    %cst_22 = arith.constant dense<0.000000e+00> : vector<152x128xf32>
    %28 = tpu.matmul %27, %4, %cst_22 {dimension_numbers = #tpu.dot_dimension_numbers<[1], [0], [0], [1], [0, 0, 1, 1], [], []>} : vector<152x128xbf16>, vector<128x128xbf16>, vector<152x128xf32> -> vector<152x128xf32>
    %29 = vector.broadcast %5 : vector<1x128xf32> to vector<152x128xf32>
    %30 = arith.addf %28, %29 : vector<152x128xf32>
    %cst_23 = arith.constant 0.000000e+00 : f32
    %31 = vector.broadcast %cst_23 : f32 to vector<152x128xf32>
    %32 = arith.cmpf ogt, %30, %31 : vector<152x128xf32>
    %cst_24 = arith.constant 0.00999999977 : f32
    %33 = vector.broadcast %cst_24 : f32 to vector<152x128xf32>
    %34 = arith.mulf %33, %30 : vector<152x128xf32>
    %35 = arith.select %32, %30, %34 : vector<152x128xi1>, vector<152x128xf32>
    %36 = arith.truncf %35 : vector<152x128xf32> to vector<152x128xbf16>
    %cst_25 = arith.constant dense<0.000000e+00> : vector<152x128xf32>
    %37 = tpu.matmul %36, %6, %cst_25 {dimension_numbers = #tpu.dot_dimension_numbers<[1], [0], [0], [1], [0, 0, 1, 1], [], []>} : vector<152x128xbf16>, vector<128x128xbf16>, vector<152x128xf32> -> vector<152x128xf32>
    %38 = vector.broadcast %7 : vector<1x128xf32> to vector<152x128xf32>
    %39 = arith.addf %37, %38 : vector<152x128xf32>
    %cst_26 = arith.constant 0.000000e+00 : f32
    %40 = vector.broadcast %cst_26 : f32 to vector<152x128xf32>
    %41 = arith.cmpf ogt, %39, %40 : vector<152x128xf32>
    %cst_27 = arith.constant 0.00999999977 : f32
    %42 = vector.broadcast %cst_27 : f32 to vector<152x128xf32>
    %43 = arith.mulf %42, %39 : vector<152x128xf32>
    %44 = arith.select %41, %39, %43 : vector<152x128xi1>, vector<152x128xf32>
    %cst_28 = arith.constant dense<0xFF800000> : vector<152xf32>
    %45 = vector.multi_reduction <maximumf>, %44, %cst_28 [1] : vector<152x128xf32> to vector<152xf32>
    %46 = vector.shape_cast %45 : vector<152xf32> to vector<152x1xf32>
    %47 = vector.broadcast %46 : vector<152x1xf32> to vector<152x128xf32>
    %48 = arith.subf %44, %47 : vector<152x128xf32>
    %49 = math.exp %48 : vector<152x128xf32>
    %cst_29 = arith.constant dense<0.000000e+00> : vector<152xf32>
    %50 = vector.multi_reduction <add>, %49, %cst_29 [1] : vector<152x128xf32> to vector<152xf32>
    %51 = vector.shape_cast %50 : vector<152xf32> to vector<152x1xf32>
    %52 = tpu.reciprocal %51 {approx = true} : vector<152x1xf32> -> vector<152x1xf32>
    %53 = vector.broadcast %52 : vector<152x1xf32> to vector<152x128xf32>
    %54 = arith.mulf %49, %53 : vector<152x128xf32>
    %55 = arith.truncf %54 : vector<152x128xf32> to vector<152x128xbf16>
    %c0_30 = arith.constant 0 : index
    %c0_31 = arith.constant 0 : index
    %56 = vector.load %arg10[%c0_30, %c0_31] : memref<304x128xbf16, #tpu.memory_space<vmem>>, vector<152x128xbf16>
    tpu.vector_store %arg10[%c0_30, %c0_31], %55 {strides = array<i32>} : memref<304x128xbf16, #tpu.memory_space<vmem>>, vector<152x128xbf16>,
    %c152 = arith.constant 152 : index
    %c0_32 = arith.constant 0 : index
    %57 = vector.load %arg1[%c152, %c0_32] : memref<304x64xf32, #tpu.memory_space<vmem>>, vector<152x64xf32>
    %58 = arith.truncf %57 : vector<152x64xf32> to vector<152x64xbf16>
    %cst_33 = arith.constant dense<0.000000e+00> : vector<152x256xf32>
    %59 = tpu.matmul %58, %0, %cst_33 {dimension_numbers = #tpu.dot_dimension_numbers<[1], [0], [0], [1], [0, 0, 1, 1], [], []>} : vector<152x64xbf16>, vector<64x256xbf16>, vector<152x256xf32> -> vector<152x256xf32>
    %60 = vector.broadcast %1 : vector<1x256xf32> to vector<152x256xf32>
    %61 = arith.addf %59, %60 : vector<152x256xf32>
    %cst_34 = arith.constant 0.000000e+00 : f32
    %62 = vector.broadcast %cst_34 : f32 to vector<152x256xf32>
    %63 = arith.cmpf ogt, %61, %62 : vector<152x256xf32>
    %cst_35 = arith.constant 0.00999999977 : f32
    %64 = vector.broadcast %cst_35 : f32 to vector<152x256xf32>
    %65 = arith.mulf %64, %61 : vector<152x256xf32>
    %66 = arith.select %63, %61, %65 : vector<152x256xi1>, vector<152x256xf32>
    %67 = arith.truncf %66 : vector<152x256xf32> to vector<152x256xbf16>
    %cst_36 = arith.constant dense<0.000000e+00> : vector<152x128xf32>
    %68 = tpu.matmul %67, %2, %cst_36 {dimension_numbers = #tpu.dot_dimension_numbers<[1], [0], [0], [1], [0, 0, 1, 1], [], []>} : vector<152x256xbf16>, vector<256x128xbf16>, vector<152x128xf32> -> vector<152x128xf32>
    %69 = vector.broadcast %3 : vector<1x128xf32> to vector<152x128xf32>
    %70 = arith.addf %68, %69 : vector<152x128xf32>
    %cst_37 = arith.constant 0.000000e+00 : f32
    %71 = vector.broadcast %cst_37 : f32 to vector<152x128xf32>
    %72 = arith.cmpf ogt, %70, %71 : vector<152x128xf32>
    %cst_38 = arith.constant 0.00999999977 : f32
    %73 = vector.broadcast %cst_38 : f32 to vector<152x128xf32>
    %74 = arith.mulf %73, %70 : vector<152x128xf32>
    %75 = arith.select %72, %70, %74 : vector<152x128xi1>, vector<152x128xf32>
    %76 = arith.truncf %75 : vector<152x128xf32> to vector<152x128xbf16>
    %cst_39 = arith.constant dense<0.000000e+00> : vector<152x128xf32>
    %77 = tpu.matmul %76, %4, %cst_39 {dimension_numbers = #tpu.dot_dimension_numbers<[1], [0], [0], [1], [0, 0, 1, 1], [], []>} : vector<152x128xbf16>, vector<128x128xbf16>, vector<152x128xf32> -> vector<152x128xf32>
    %78 = vector.broadcast %5 : vector<1x128xf32> to vector<152x128xf32>
    %79 = arith.addf %77, %78 : vector<152x128xf32>
    %cst_40 = arith.constant 0.000000e+00 : f32
    %80 = vector.broadcast %cst_40 : f32 to vector<152x128xf32>
    %81 = arith.cmpf ogt, %79, %80 : vector<152x128xf32>
    %cst_41 = arith.constant 0.00999999977 : f32
    %82 = vector.broadcast %cst_41 : f32 to vector<152x128xf32>
    %83 = arith.mulf %82, %79 : vector<152x128xf32>
    %84 = arith.select %81, %79, %83 : vector<152x128xi1>, vector<152x128xf32>
    %85 = arith.truncf %84 : vector<152x128xf32> to vector<152x128xbf16>
    %cst_42 = arith.constant dense<0.000000e+00> : vector<152x128xf32>
    %86 = tpu.matmul %85, %6, %cst_42 {dimension_numbers = #tpu.dot_dimension_numbers<[1], [0], [0], [1], [0, 0, 1, 1], [], []>} : vector<152x128xbf16>, vector<128x128xbf16>, vector<152x128xf32> -> vector<152x128xf32>
    %87 = vector.broadcast %7 : vector<1x128xf32> to vector<152x128xf32>
    %88 = arith.addf %86, %87 : vector<152x128xf32>
    %cst_43 = arith.constant 0.000000e+00 : f32
    %89 = vector.broadcast %cst_43 : f32 to vector<152x128xf32>
    %90 = arith.cmpf ogt, %88, %89 : vector<152x128xf32>
    %cst_44 = arith.constant 0.00999999977 : f32
    %91 = vector.broadcast %cst_44 : f32 to vector<152x128xf32>
    %92 = arith.mulf %91, %88 : vector<152x128xf32>
    %93 = arith.select %90, %88, %92 : vector<152x128xi1>, vector<152x128xf32>
    %cst_45 = arith.constant dense<0xFF800000> : vector<152xf32>
    %94 = vector.multi_reduction <maximumf>, %93, %cst_45 [1] : vector<152x128xf32> to vector<152xf32>
    %95 = vector.shape_cast %94 : vector<152xf32> to vector<152x1xf32>
    %96 = vector.broadcast %95 : vector<152x1xf32> to vector<152x128xf32>
    %97 = arith.subf %93, %96 : vector<152x128xf32>
    %98 = math.exp %97 : vector<152x128xf32>
    %cst_46 = arith.constant dense<0.000000e+00> : vector<152xf32>
    %99 = vector.multi_reduction <add>, %98, %cst_46 [1] : vector<152x128xf32> to vector<152xf32>
    %100 = vector.shape_cast %99 : vector<152xf32> to vector<152x1xf32>
    %101 = tpu.reciprocal %100 {approx = true} : vector<152x1xf32> -> vector<152x1xf32>
    %102 = vector.broadcast %101 : vector<152x1xf32> to vector<152x128xf32>
    %103 = arith.mulf %98, %102 : vector<152x128xf32>
    %104 = arith.truncf %103 : vector<152x128xf32> to vector<152x128xbf16>
    %c152_47 = arith.constant 152 : index
    %c0_48 = arith.constant 0 : index
    %105 = vector.load %arg10[%c152_47, %c0_48] : memref<304x128xbf16, #tpu.memory_space<vmem>>, vector<152x128xbf16>
    tpu.vector_store %arg10[%c152_47, %c0_48], %104 {strides = array<i32>} : memref<304x128xbf16, #tpu.memory_space<vmem>>, vector<152x128xbf16>,
    return
  }
  func.func @transform_0(%arg0: i32) -> (i32, i32) {
    %c0_i32 = arith.constant 0 : i32
    %c0_i32_0 = arith.constant 0 : i32
    return %arg0, %c0_i32 : i32, i32
  }
  func.func @transform_1(%arg0: i32) -> (i32, i32) {
    %c0_i32 = arith.constant 0 : i32
    %c0_i32_0 = arith.constant 0 : i32
    %c0_i32_1 = arith.constant 0 : i32
    return %c0_i32, %c0_i32_0 : i32, i32
  }
  func.func @transform_2(%arg0: i32) -> (i32, i32) {
    %c0_i32 = arith.constant 0 : i32
    %c0_i32_0 = arith.constant 0 : i32
    %c0_i32_1 = arith.constant 0 : i32
    return %c0_i32, %c0_i32_0 : i32, i32
  }
  func.func @transform_3(%arg0: i32) -> (i32, i32) {
    %c0_i32 = arith.constant 0 : i32
    %c0_i32_0 = arith.constant 0 : i32
    %c0_i32_1 = arith.constant 0 : i32
    return %c0_i32, %c0_i32_0 : i32, i32
  }
  func.func @transform_4(%arg0: i32) -> (i32, i32) {
    %c0_i32 = arith.constant 0 : i32
    %c0_i32_0 = arith.constant 0 : i32
    %c0_i32_1 = arith.constant 0 : i32
    return %c0_i32, %c0_i32_0 : i32, i32
  }
  func.func @transform_5(%arg0: i32) -> (i32, i32) {
    %c0_i32 = arith.constant 0 : i32
    %c0_i32_0 = arith.constant 0 : i32
    %c0_i32_1 = arith.constant 0 : i32
    return %c0_i32, %c0_i32_0 : i32, i32
  }
  func.func @transform_6(%arg0: i32) -> (i32, i32) {
    %c0_i32 = arith.constant 0 : i32
    %c0_i32_0 = arith.constant 0 : i32
    %c0_i32_1 = arith.constant 0 : i32
    return %c0_i32, %c0_i32_0 : i32, i32
  }
  func.func @transform_7(%arg0: i32) -> (i32, i32) {
    %c0_i32 = arith.constant 0 : i32
    %c0_i32_0 = arith.constant 0 : i32
    %c0_i32_1 = arith.constant 0 : i32
    return %c0_i32, %c0_i32_0 : i32, i32
  }
  func.func @transform_8(%arg0: i32) -> (i32, i32) {
    %c0_i32 = arith.constant 0 : i32
    %c0_i32_0 = arith.constant 0 : i32
    %c0_i32_1 = arith.constant 0 : i32
    return %c0_i32, %c0_i32_0 : i32, i32
  }
  func.func @transform_9(%arg0: i32) -> (i32, i32) {
    %c0_i32 = arith.constant 0 : i32
    %c0_i32_0 = arith.constant 0 : i32
    return %arg0, %c0_i32 : i32, i32
  }
}

</mosaic_0001>

<llo_original>
// kernel: fcn_for_encoder.1
$region0: #{fcn_for_encoder.1}
  #allocation0 [shape = 'u32[]', space=smem, size = 0x4, offset = 0x4, fixed_abs, tag = 'smem constant byte address 0x4 - core index']
  #allocation1 [shape = 'u32[72,128]{1,0:T(1,128)}', space=vmem, size = 0x9000, scoped, tag = 'internal scratch']
  %s0 = inlined_call_operand.vmem [shape: f32[304,64], index: 0, kind: input, shape index: {}]
  %s1 = inlined_call_operand.vmem [shape: bf16[64,256], index: 1, kind: input, shape index: {}]
  %s2 = inlined_call_operand.vmem [shape: f32[1,256], index: 2, kind: input, shape index: {}]
  %s3 = inlined_call_operand.vmem [shape: bf16[256,128], index: 3, kind: input, shape index: {}]
  %s4 = inlined_call_operand.vmem [shape: f32[1,128], index: 4, kind: input, shape index: {}]
  %s5 = inlined_call_operand.vmem [shape: bf16[128,128], index: 5, kind: input, shape index: {}]
  %s6 = inlined_call_operand.vmem [shape: f32[1,128], index: 6, kind: input, shape index: {}]
  %s7 = inlined_call_operand.vmem [shape: bf16[128,128], index: 7, kind: input, shape index: {}]
  %s8 = inlined_call_operand.vmem [shape: f32[1,128], index: 8, kind: input, shape index: {}]
  %s9 = inlined_call_operand.vmem [shape: bf16[304,128], index: 9, kind: output, shape index: {}]
  %s10 = sld [smem:[#allocation0]]
  $region46: #{fcn_for_encoder.1} parent=0
    _
  %s12 = ssub.s32 1, %s10
  %s13 = scalar_select 0, %s12, %s10
  // Predicated region
  $region2: #{fcn_for_encoder.1} parent=0 // pred_check
    _
  $region3: #{fcn_for_encoder.1} parent=0 // pred_check_branch
    %15 = sbr.rel (0) target = $region5
  $region4: #{fcn_for_encoder.1} parent=0 // pred_region
    _
  $region5: #{fcn_for_encoder.1} parent=0 // pred_fallthru
    _
  // Predicated region
  $region6: #{fcn_for_encoder.1} parent=0 // pred_check
    _
  $region7: #{fcn_for_encoder.1} parent=0 // pred_check_branch
    %17 = sbr.rel (0) target = $region9
  $region8: #{fcn_for_encoder.1} parent=0 // pred_region
    _
  $region9: #{fcn_for_encoder.1} parent=0 // pred_fallthru
    _
  // Predicated region
  $region10: #{fcn_for_encoder.1} parent=0 // pred_check
    _
  $region11: #{fcn_for_encoder.1} parent=0 // pred_check_branch
    %19 = sbr.rel (0) target = $region13
  $region12: #{fcn_for_encoder.1} parent=0 // pred_region
    _
  $region13: #{fcn_for_encoder.1} parent=0 // pred_fallthru
    _
  // Predicated region
  $region14: #{fcn_for_encoder.1} parent=0 // pred_check
    _
  $region15: #{fcn_for_encoder.1} parent=0 // pred_check_branch
    %21 = sbr.rel (0) target = $region17
  $region16: #{fcn_for_encoder.1} parent=0 // pred_region
    _
  $region17: #{fcn_for_encoder.1} parent=0 // pred_fallthru
    _
  // Predicated region
  $region18: #{fcn_for_encoder.1} parent=0 // pred_check
    _
  $region19: #{fcn_for_encoder.1} parent=0 // pred_check_branch
    %23 = sbr.rel (0) target = $region21
  $region20: #{fcn_for_encoder.1} parent=0 // pred_region
    _
  $region21: #{fcn_for_encoder.1} parent=0 // pred_fallthru
    _
  // Predicated region
  $region22: #{fcn_for_encoder.1} parent=0 // pred_check
    _
  $region23: #{fcn_for_encoder.1} parent=0 // pred_check_branch
    %25 = sbr.rel (0) target = $region25
  $region24: #{fcn_for_encoder.1} parent=0 // pred_region
    _
  $region25: #{fcn_for_encoder.1} parent=0 // pred_fallthru
    _
  // Predicated region
  $region26: #{fcn_for_encoder.1} parent=0 // pred_check
    _
  $region27: #{fcn_for_encoder.1} parent=0 // pred_check_branch
    %27 = sbr.rel (0) target = $region29
  $region28: #{fcn_for_encoder.1} parent=0 // pred_region
    _
  $region29: #{fcn_for_encoder.1} parent=0 // pred_fallthru
    _
  // Predicated region
  $region30: #{fcn_for_encoder.1} parent=0 // pred_check
    _
  $region31: #{fcn_for_encoder.1} parent=0 // pred_check_branch
    %29 = sbr.rel (0) target = $region33
  $region32: #{fcn_for_encoder.1} parent=0 // pred_region
    _
  $region33: #{fcn_for_encoder.1} parent=0 // pred_fallthru
    _
  // Predicated region
  $region34: #{fcn_for_encoder.1} parent=0 // pred_check
    _
  $region35: #{fcn_for_encoder.1} parent=0 // pred_check_branch
    %31 = sbr.rel (0) target = $region37
  $region36: #{fcn_for_encoder.1} parent=0 // pred_region
    _
  $region37: #{fcn_for_encoder.1} parent=0 // pred_fallthru
    _
  %v33 = vld [vmem:[%s1] sm:$0xff]
  %v34 = vld [vmem:[%s1 + $0x8] sm:$0xff]
  %v35 = vld [vmem:[%s1 + $0x10] sm:$0xff]
  %v36 = vld [vmem:[%s1 + $0x18] sm:$0xff]
  %v37 = vld [vmem:[%s1 + $0x20] sm:$0xff]
  %v38 = vld [vmem:[%s1 + $0x28] sm:$0xff]
  %v39 = vld [vmem:[%s1 + $0x30] sm:$0xff]
  %v40 = vld [vmem:[%s1 + $0x38] sm:$0xff]
  %v41 = vld [vmem:[%s2] sm:$0x3]
  %v42 = vld [vmem:[%s3] sm:$0xf]
  %v43 = vld [vmem:[%s3 + $0x4] sm:$0xf]
  %v44 = vld [vmem:[%s3 + $0x8] sm:$0xf]
  %v45 = vld [vmem:[%s3 + $0xc] sm:$0xf]
  %v46 = vld [vmem:[%s3 + $0x10] sm:$0xf]
  %v47 = vld [vmem:[%s3 + $0x14] sm:$0xf]
  %v48 = vld [vmem:[%s3 + $0x18] sm:$0xf]
  %v49 = vld [vmem:[%s3 + $0x1c] sm:$0xf]
  %v50 = vld [vmem:[%s3 + $0x20] sm:$0xf]
  %v51 = vld [vmem:[%s3 + $0x24] sm:$0xf]
  %v52 = vld [vmem:[%s3 + $0x28] sm:$0xf]
  %v53 = vld [vmem:[%s3 + $0x2c] sm:$0xf]
  %v54 = vld [vmem:[%s3 + $0x30] sm:$0xf]
  %v55 = vld [vmem:[%s3 + $0x34] sm:$0xf]
  %v56 = vld [vmem:[%s3 + $0x38] sm:$0xf]
  %v57 = vld [vmem:[%s3 + $0x3c] sm:$0xf]
  %v58 = vld [vmem:[%s3 + $0x40] sm:$0xf]
  %v59 = vld [vmem:[%s3 + $0x44] sm:$0xf]
  %v60 = vld [vmem:[%s3 + $0x48] sm:$0xf]
  %v61 = vld [vmem:[%s3 + $0x4c] sm:$0xf]
  %v62 = vld [vmem:[%s3 + $0x50] sm:$0xf]
  %v63 = vld [vmem:[%s3 + $0x54] sm:$0xf]
  %v64 = vld [vmem:[%s3 + $0x58] sm:$0xf]
  %v65 = vld [vmem:[%s3 + $0x5c] sm:$0xf]
  %v66 = vld [vmem:[%s3 + $0x60] sm:$0xf]
  %v67 = vld [vmem:[%s3 + $0x64] sm:$0xf]
  %v68 = vld [vmem:[%s3 + $0x68] sm:$0xf]
  %v69 = vld [vmem:[%s3 + $0x6c] sm:$0xf]
  %v70 = vld [vmem:[%s3 + $0x70] sm:$0xf]
  %v71 = vld [vmem:[%s3 + $0x74] sm:$0xf]
  %v72 = vld [vmem:[%s3 + $0x78] sm:$0xf]
  %v73 = vld [vmem:[%s3 + $0x7c] sm:$0xf]
  %v74 = vld [vmem:[%s4] sm:$0x1]
  %v75 = vld [vmem:[%s5] sm:$0xf]
  %v76 = vld [vmem:[%s5 + $0x4] sm:$0xf]
  %v77 = vld [vmem:[%s5 + $0x8] sm:$0xf]
  %v78 = vld [vmem:[%s5 + $0xc] sm:$0xf]
  %v79 = vld [vmem:[%s5 + $0x10] sm:$0xf]
  %v80 = vld [vmem:[%s5 + $0x14] sm:$0xf]
  %v81 = vld [vmem:[%s5 + $0x18] sm:$0xf]
  %v82 = vld [vmem:[%s5 + $0x1c] sm:$0xf]
  %v83 = vld [vmem:[%s5 + $0x20] sm:$0xf]
  %v84 = vld [vmem:[%s5 + $0x24] sm:$0xf]
  %v85 = vld [vmem:[%s5 + $0x28] sm:$0xf]
  %v86 = vld [vmem:[%s5 + $0x2c] sm:$0xf]
  %v87 = vld [vmem:[%s5 + $0x30] sm:$0xf]
  %v88 = vld [vmem:[%s5 + $0x34] sm:$0xf]
  %v89 = vld [vmem:[%s5 + $0x38] sm:$0xf]
  %v90 = vld [vmem:[%s5 + $0x3c] sm:$0xf]
  %v91 = vld [vmem:[%s6] sm:$0x1]
  %v92 = vld [vmem:[%s7] sm:$0xf]
  %v93 = vld [vmem:[%s7 + $0x4] sm:$0xf]
  %v94 = vld [vmem:[%s7 + $0x8] sm:$0xf]
  %v95 = vld [vmem:[%s7 + $0xc] sm:$0xf]
  %v96 = vld [vmem:[%s7 + $0x10] sm:$0xf]
  %v97 = vld [vmem:[%s7 + $0x14] sm:$0xf]
  %v98 = vld [vmem:[%s7 + $0x18] sm:$0xf]
  %v99 = vld [vmem:[%s7 + $0x1c] sm:$0xf]
  %v100 = vld [vmem:[%s7 + $0x20] sm:$0xf]
  %v101 = vld [vmem:[%s7 + $0x24] sm:$0xf]
  %v102 = vld [vmem:[%s7 + $0x28] sm:$0xf]
  %v103 = vld [vmem:[%s7 + $0x2c] sm:$0xf]
  %v104 = vld [vmem:[%s7 + $0x30] sm:$0xf]
  %v105 = vld [vmem:[%s7 + $0x34] sm:$0xf]
  %v106 = vld [vmem:[%s7 + $0x38] sm:$0xf]
  %v107 = vld [vmem:[%s7 + $0x3c] sm:$0xf]
  %v108 = vld [vmem:[%s8] sm:$0x1]
  %v109 = vld [vmem:[%s0] sm:$0xff]
  %v110 = vld [vmem:[%s0 + $0x8] sm:$0xff]
  %v111 = vld [vmem:[%s0 + $0x10] sm:$0xff]
  %v112 = vld [vmem:[%s0 + $0x18] sm:$0xff]
  %v113 = vld [vmem:[%s0 + $0x20] sm:$0xff]
  %v114 = vld [vmem:[%s0 + $0x28] sm:$0xff]
  %v115 = vld [vmem:[%s0 + $0x30] sm:$0xff]
  %v116 = vld [vmem:[%s0 + $0x38] sm:$0xff]
  %v117 = vld [vmem:[%s0 + $0x40] sm:$0xff]
  %v118 = vld [vmem:[%s0 + $0x48] sm:$0xff]
  %v119 = vld [vmem:[%s0 + $0x50] sm:$0xff]
  %v120 = vld [vmem:[%s0 + $0x58] sm:$0xff]
  %v121 = vld [vmem:[%s0 + $0x60] sm:$0xff]
  %v122 = vld [vmem:[%s0 + $0x68] sm:$0xff]
  %v123 = vld [vmem:[%s0 + $0x70] sm:$0xff]
  %v124 = vld [vmem:[%s0 + $0x78] sm:$0xff]
  %v125 = vld [vmem:[%s0 + $0x80] sm:$0xff]
  %v126 = vld [vmem:[%s0 + $0x88] sm:$0xff]
  %v127 = vld [vmem:[%s0 + $0x90] sm:$0xff]
  %v128 = vpack.c.bf16 %v110, %v109
  %v129 = vpack.c.bf16 %v112, %v111
  %v130 = vpack.c.bf16 %v114, %v113
  %v131 = vpack.c.bf16 %v116, %v115
  %v132 = vpack.c.bf16 %v118, %v117
  %v133 = vpack.c.bf16 %v120, %v119
  %v134 = vpack.c.bf16 %v122, %v121
  %v135 = vpack.c.bf16 %v124, %v123
  %v136 = vpack.c.bf16 %v126, %v125
  %v137 = vpack.c.bf16 %v127, %v127
  %v139 = vperm.slane %v41, 0
  %v140 = vperm.slane %v41, 1
  %v151 = vunpack.c.l.b16 %v33
  %v152 = vunpack.c.h.b16 %v33
  %v153 = vunpack.c.l.b16 %v34
  %v154 = vunpack.c.h.b16 %v34
  %v155 = vunpack.c.l.b16 %v35
  %v156 = vunpack.c.h.b16 %v35
  %v157 = vunpack.c.l.b16 %v36
  %v158 = vunpack.c.h.b16 %v36
  %v159 = vunpack.c.l.b16 %v37
  %v160 = vunpack.c.h.b16 %v37
  %v161 = vunpack.c.l.b16 %v38
  %v162 = vunpack.c.h.b16 %v38
  %v163 = vunpack.c.l.b16 %v39
  %v164 = vunpack.c.h.b16 %v39
  %v165 = vunpack.c.l.b16 %v40
  %v166 = vunpack.c.h.b16 %v40
  %v167 = vpack.c.b16 %v153, %v151
  %v168 = vpack.c.b16 %v154, %v152
  %v169 = vpack.c.b16 %v157, %v155
  %v170 = vpack.c.b16 %v158, %v156
  %v171 = vpack.c.b16 %v161, %v159
  %v172 = vpack.c.b16 %v162, %v160
  %v173 = vpack.c.b16 %v165, %v163
  %v174 = vpack.c.b16 %v166, %v164
  %vm183 = vcmask 523264
  %v185 = vsel %vm183, %v128, 0
  %v188 = vsel %vm183, %v129, 0
  %v191 = vsel %vm183, %v130, 0
  %v194 = vsel %vm183, %v131, 0
  %v197 = vsel %vm183, %v132, 0
  %v200 = vsel %vm183, %v133, 0
  %v203 = vsel %vm183, %v134, 0
  %v206 = vsel %vm183, %v135, 0
  %v209 = vsel %vm183, %v136, 0
  %v212 = vsel %vm183, %v137, 0
  %214 = vmatpush.bf16.msra.mxu0 0
  %215 = vmatpush.bf16.msra.mxu0 0
  %216 = vmatpush.bf16.msra.mxu0 0
  %217 = vmatpush.bf16.msra.mxu0 0
  %218 = vmatpush.bf16.msra.mxu0 %v173
  %219 = vmatpush.bf16.msra.mxu0 %v171
  %220 = vmatpush.bf16.msra.mxu0 %v169
  %221 = vmatpush.bf16.msra.mxu0 %v167
  %222 = vmatmul.bf16.gmra.mxu0 %v185
  %v223 = vpop.f32.mrf.mxu0
  %v224 = vadd.f32 %v139, %v223
  %v225 = vpop.f32.mrf.mxu0
  %v226 = vadd.f32 %v139, %v225
  %227 = vmatmul.bf16.gmra.mxu0 %v188
  %v228 = vpop.f32.mrf.mxu0
  %v229 = vadd.f32 %v139, %v228
  %v230 = vpop.f32.mrf.mxu0
  %v231 = vadd.f32 %v139, %v230
  %232 = vmatmul.bf16.gmra.mxu0 %v191
  %v233 = vpop.f32.mrf.mxu0
  %v234 = vadd.f32 %v139, %v233
  %v235 = vpop.f32.mrf.mxu0
  %v236 = vadd.f32 %v139, %v235
  %237 = vmatmul.bf16.gmra.mxu0 %v194
  %v238 = vpop.f32.mrf.mxu0
  %v239 = vadd.f32 %v139, %v238
  %v240 = vpop.f32.mrf.mxu0
  %v241 = vadd.f32 %v139, %v240
  %242 = vmatmul.bf16.gmra.mxu0 %v197
  %v243 = vpop.f32.mrf.mxu0
  %v244 = vadd.f32 %v139, %v243
  %v245 = vpop.f32.mrf.mxu0
  %v246 = vadd.f32 %v139, %v245
  %247 = vmatmul.bf16.gmra.mxu0 %v200
  %v248 = vpop.f32.mrf.mxu0
  %v249 = vadd.f32 %v139, %v248
  %v250 = vpop.f32.mrf.mxu0
  %v251 = vadd.f32 %v139, %v250
  %252 = vmatmul.bf16.gmra.mxu0 %v203
  %v253 = vpop.f32.mrf.mxu0
  %v254 = vadd.f32 %v139, %v253
  %v255 = vpop.f32.mrf.mxu0
  %v256 = vadd.f32 %v139, %v255
  %257 = vmatmul.bf16.gmra.mxu0 %v206
  %v258 = vpop.f32.mrf.mxu0
  %v259 = vadd.f32 %v139, %v258
  %v260 = vpop.f32.mrf.mxu0
  %v261 = vadd.f32 %v139, %v260
  %262 = vmatmul.bf16.gmra.mxu0 %v209
  %v263 = vpop.f32.mrf.mxu0
  %v264 = vadd.f32 %v139, %v263
  %v265 = vpop.f32.mrf.mxu0
  %v266 = vadd.f32 %v139, %v265
  %267 = vmatmul.bf16.gmra.mxu0 %v212
  %v268 = vpop.f32.mrf.mxu0
  %v269 = vadd.f32 %v139, %v268
  %v270 = vpop.f32.mrf.mxu0
  %271 = vdwg.mxu0
  %272 = vmatpush.bf16.msra.mxu0 0
  %273 = vmatpush.bf16.msra.mxu0 0
  %274 = vmatpush.bf16.msra.mxu0 0
  %275 = vmatpush.bf16.msra.mxu0 0
  %276 = vmatpush.bf16.msra.mxu0 %v174
  %277 = vmatpush.bf16.msra.mxu0 %v172
  %278 = vmatpush.bf16.msra.mxu0 %v170
  %279 = vmatpush.bf16.msra.mxu0 %v168
  %280 = vmatmul.bf16.gmra.mxu0 %v185
  %v281 = vpop.f32.mrf.mxu0
  %v282 = vadd.f32 %v140, %v281
  %v283 = vpop.f32.mrf.mxu0
  %v284 = vadd.f32 %v140, %v283
  %285 = vmatmul.bf16.gmra.mxu0 %v188
  %v286 = vpop.f32.mrf.mxu0
  %v287 = vadd.f32 %v140, %v286
  %v288 = vpop.f32.mrf.mxu0
  %v289 = vadd.f32 %v140, %v288
  %290 = vmatmul.bf16.gmra.mxu0 %v191
  %v291 = vpop.f32.mrf.mxu0
  %v292 = vadd.f32 %v140, %v291
  %v293 = vpop.f32.mrf.mxu0
  %v294 = vadd.f32 %v140, %v293
  %295 = vmatmul.bf16.gmra.mxu0 %v194
  %v296 = vpop.f32.mrf.mxu0
  %v297 = vadd.f32 %v140, %v296
  %v298 = vpop.f32.mrf.mxu0
  %v299 = vadd.f32 %v140, %v298
  %300 = vmatmul.bf16.gmra.mxu0 %v197
  %v301 = vpop.f32.mrf.mxu0
  %v302 = vadd.f32 %v140, %v301
  %v303 = vpop.f32.mrf.mxu0
  %v304 = vadd.f32 %v140, %v303
  %305 = vmatmul.bf16.gmra.mxu0 %v200
  %v306 = vpop.f32.mrf.mxu0
  %v307 = vadd.f32 %v140, %v306
  %v308 = vpop.f32.mrf.mxu0
  %v309 = vadd.f32 %v140, %v308
  %310 = vmatmul.bf16.gmra.mxu0 %v203
  %v311 = vpop.f32.mrf.mxu0
  %v312 = vadd.f32 %v140, %v311
  %v313 = vpop.f32.mrf.mxu0
  %v314 = vadd.f32 %v140, %v313
  %315 = vmatmul.bf16.gmra.mxu0 %v206
  %v316 = vpop.f32.mrf.mxu0
  %v317 = vadd.f32 %v140, %v316
  %v318 = vpop.f32.mrf.mxu0
  %v319 = vadd.f32 %v140, %v318
  %320 = vmatmul.bf16.gmra.mxu0 %v209
  %v321 = vpop.f32.mrf.mxu0
  %v322 = vadd.f32 %v140, %v321
  %v323 = vpop.f32.mrf.mxu0
  %v324 = vadd.f32 %v140, %v323
  %325 = vmatmul.bf16.gmra.mxu0 %v212
  %v326 = vpop.f32.mrf.mxu0
  %v327 = vadd.f32 %v140, %v326
  %v328 = vpop.f32.mrf.mxu0
  %329 = vdwg.mxu0
  %vm330 = vcmp.gt.f32.partialorder %v224, 0.0
  %vm331 = vcmp.gt.f32.partialorder %v282, 0.0
  %vm332 = vcmp.gt.f32.partialorder %v226, 0.0
  %vm333 = vcmp.gt.f32.partialorder %v284, 0.0
  %vm334 = vcmp.gt.f32.partialorder %v229, 0.0
  %vm335 = vcmp.gt.f32.partialorder %v287, 0.0
  %vm336 = vcmp.gt.f32.partialorder %v231, 0.0
  %vm337 = vcmp.gt.f32.partialorder %v289, 0.0
  %vm338 = vcmp.gt.f32.partialorder %v234, 0.0
  %vm339 = vcmp.gt.f32.partialorder %v292, 0.0
  %vm340 = vcmp.gt.f32.partialorder %v236, 0.0
  %vm341 = vcmp.gt.f32.partialorder %v294, 0.0
  %vm342 = vcmp.gt.f32.partialorder %v239, 0.0
  %vm343 = vcmp.gt.f32.partialorder %v297, 0.0
  %vm344 = vcmp.gt.f32.partialorder %v241, 0.0
  %vm345 = vcmp.gt.f32.partialorder %v299, 0.0
  %vm346 = vcmp.gt.f32.partialorder %v244, 0.0
  %vm347 = vcmp.gt.f32.partialorder %v302, 0.0
  %vm348 = vcmp.gt.f32.partialorder %v246, 0.0
  %vm349 = vcmp.gt.f32.partialorder %v304, 0.0
  %vm350 = vcmp.gt.f32.partialorder %v249, 0.0
  %vm351 = vcmp.gt.f32.partialorder %v307, 0.0
  %vm352 = vcmp.gt.f32.partialorder %v251, 0.0
  %vm353 = vcmp.gt.f32.partialorder %v309, 0.0
  %vm354 = vcmp.gt.f32.partialorder %v254, 0.0
  %vm355 = vcmp.gt.f32.partialorder %v312, 0.0
  %vm356 = vcmp.gt.f32.partialorder %v256, 0.0
  %vm357 = vcmp.gt.f32.partialorder %v314, 0.0
  %vm358 = vcmp.gt.f32.partialorder %v259, 0.0
  %vm359 = vcmp.gt.f32.partialorder %v317, 0.0
  %vm360 = vcmp.gt.f32.partialorder %v261, 0.0
  %vm361 = vcmp.gt.f32.partialorder %v319, 0.0
  %vm362 = vcmp.gt.f32.partialorder %v264, 0.0
  %vm363 = vcmp.gt.f32.partialorder %v322, 0.0
  %vm364 = vcmp.gt.f32.partialorder %v266, 0.0
  %vm365 = vcmp.gt.f32.partialorder %v324, 0.0
  %vm366 = vcmp.gt.f32.partialorder %v269, 0.0
  %vm367 = vcmp.gt.f32.partialorder %v327, 0.0
  %v368 = vmul.f32 %v224, 0.01
  %v369 = vmul.f32 %v282, 0.01
  %v370 = vmul.f32 %v226, 0.01
  %v371 = vmul.f32 %v284, 0.01
  %v372 = vmul.f32 %v229, 0.01
  %v373 = vmul.f32 %v287, 0.01
  %v374 = vmul.f32 %v231, 0.01
  %v375 = vmul.f32 %v289, 0.01
  %v376 = vmul.f32 %v234, 0.01
  %v377 = vmul.f32 %v292, 0.01
  %v378 = vmul.f32 %v236, 0.01
  %v379 = vmul.f32 %v294, 0.01
  %v380 = vmul.f32 %v239, 0.01
  %v381 = vmul.f32 %v297, 0.01
  %v382 = vmul.f32 %v241, 0.01
  %v383 = vmul.f32 %v299, 0.01
  %v384 = vmul.f32 %v244, 0.01
  %v385 = vmul.f32 %v302, 0.01
  %v386 = vmul.f32 %v246, 0.01
  %v387 = vmul.f32 %v304, 0.01
  %v388 = vmul.f32 %v249, 0.01
  %v389 = vmul.f32 %v307, 0.01
  %v390 = vmul.f32 %v251, 0.01
  %v391 = vmul.f32 %v309, 0.01
  %v392 = vmul.f32 %v254, 0.01
  %v393 = vmul.f32 %v312, 0.01
  %v394 = vmul.f32 %v256, 0.01
  %v395 = vmul.f32 %v314, 0.01
  %v396 = vmul.f32 %v259, 0.01
  %v397 = vmul.f32 %v317, 0.01
  %v398 = vmul.f32 %v261, 0.01
  %v399 = vmul.f32 %v319, 0.01
  %v400 = vmul.f32 %v264, 0.01
  %v401 = vmul.f32 %v322, 0.01
  %v402 = vmul.f32 %v266, 0.01
  %v403 = vmul.f32 %v324, 0.01
  %v404 = vmul.f32 %v269, 0.01
  %v405 = vmul.f32 %v327, 0.01
  %v406 = vsel %vm330, %v224, %v368
  %v407 = vsel %vm331, %v282, %v369
  %v408 = vsel %vm332, %v226, %v370
  %v409 = vsel %vm333, %v284, %v371
  %v410 = vsel %vm334, %v229, %v372
  %v411 = vsel %vm335, %v287, %v373
  %v412 = vsel %vm336, %v231, %v374
  %v413 = vsel %vm337, %v289, %v375
  %v414 = vsel %vm338, %v234, %v376
  %v415 = vsel %vm339, %v292, %v377
  %v416 = vsel %vm340, %v236, %v378
  %v417 = vsel %vm341, %v294, %v379
  %v418 = vsel %vm342, %v239, %v380
  %v419 = vsel %vm343, %v297, %v381
  %v420 = vsel %vm344, %v241, %v382
  %v421 = vsel %vm345, %v299, %v383
  %v422 = vsel %vm346, %v244, %v384
  %v423 = vsel %vm347, %v302, %v385
  %v424 = vsel %vm348, %v246, %v386
  %v425 = vsel %vm349, %v304, %v387
  %v426 = vsel %vm350, %v249, %v388
  %v427 = vsel %vm351, %v307, %v389
  %v428 = vsel %vm352, %v251, %v390
  %v429 = vsel %vm353, %v309, %v391
  %v430 = vsel %vm354, %v254, %v392
  %v431 = vsel %vm355, %v312, %v393
  %v432 = vsel %vm356, %v256, %v394
  %v433 = vsel %vm357, %v314, %v395
  %v434 = vsel %vm358, %v259, %v396
  %v435 = vsel %vm359, %v317, %v397
  %v436 = vsel %vm360, %v261, %v398
  %v437 = vsel %vm361, %v319, %v399
  %v438 = vsel %vm362, %v264, %v400
  %v439 = vsel %vm363, %v322, %v401
  %v440 = vsel %vm364, %v266, %v402
  %v441 = vsel %vm365, %v324, %v403
  %v442 = vsel %vm366, %v269, %v404
  %v443 = vsel %vm367, %v327, %v405
  %v444 = vpack.c.bf16 %v408, %v406
  %v445 = vpack.c.bf16 %v409, %v407
  %v446 = vpack.c.bf16 %v412, %v410
  %v447 = vpack.c.bf16 %v413, %v411
  %v448 = vpack.c.bf16 %v416, %v414
  %v449 = vpack.c.bf16 %v417, %v415
  %v450 = vpack.c.bf16 %v420, %v418
  %v451 = vpack.c.bf16 %v421, %v419
  %v452 = vpack.c.bf16 %v424, %v422
  %v453 = vpack.c.bf16 %v425, %v423
  %v454 = vpack.c.bf16 %v428, %v426
  %v455 = vpack.c.bf16 %v429, %v427
  %v456 = vpack.c.bf16 %v432, %v430
  %v457 = vpack.c.bf16 %v433, %v431
  %v458 = vpack.c.bf16 %v436, %v434
  %v459 = vpack.c.bf16 %v437, %v435
  %v460 = vpack.c.bf16 %v440, %v438
  %v461 = vpack.c.bf16 %v441, %v439
  %v462 = vpack.c.bf16 %v442, %v442
  %v463 = vpack.c.bf16 %v443, %v443
  %v465 = vperm.slane %v74, 0
  %v499 = vunpack.c.l.b16 %v42
  %v500 = vunpack.c.l.b16 %v43
  %v501 = vunpack.c.l.b16 %v44
  %v502 = vunpack.c.l.b16 %v45
  %v503 = vunpack.c.l.b16 %v46
  %v504 = vunpack.c.l.b16 %v47
  %v505 = vunpack.c.l.b16 %v48
  %v506 = vunpack.c.l.b16 %v49
  %v507 = vunpack.c.l.b16 %v50
  %v508 = vunpack.c.l.b16 %v51
  %v509 = vunpack.c.l.b16 %v52
  %v510 = vunpack.c.l.b16 %v53
  %v511 = vunpack.c.l.b16 %v54
  %v512 = vunpack.c.l.b16 %v55
  %v513 = vunpack.c.l.b16 %v56
  %v514 = vunpack.c.l.b16 %v57
  %v515 = vunpack.c.l.b16 %v58
  %v516 = vunpack.c.l.b16 %v59
  %v517 = vunpack.c.l.b16 %v60
  %v518 = vunpack.c.l.b16 %v61
  %v519 = vunpack.c.l.b16 %v62
  %v520 = vunpack.c.l.b16 %v63
  %v521 = vunpack.c.l.b16 %v64
  %v522 = vunpack.c.l.b16 %v65
  %v523 = vunpack.c.l.b16 %v66
  %v524 = vunpack.c.l.b16 %v67
  %v525 = vunpack.c.l.b16 %v68
  %v526 = vunpack.c.l.b16 %v69
  %v527 = vunpack.c.l.b16 %v70
  %v528 = vunpack.c.l.b16 %v71
  %v529 = vunpack.c.l.b16 %v72
  %v530 = vunpack.c.l.b16 %v73
  %v531 = vpack.c.b16 %v500, %v499
  %v532 = vpack.c.b16 %v502, %v501
  %v533 = vpack.c.b16 %v504, %v503
  %v534 = vpack.c.b16 %v506, %v505
  %v535 = vpack.c.b16 %v508, %v507
  %v536 = vpack.c.b16 %v510, %v509
  %v537 = vpack.c.b16 %v512, %v511
  %v538 = vpack.c.b16 %v514, %v513
  %v539 = vpack.c.b16 %v516, %v515
  %v540 = vpack.c.b16 %v518, %v517
  %v541 = vpack.c.b16 %v520, %v519
  %v542 = vpack.c.b16 %v522, %v521
  %v543 = vpack.c.b16 %v524, %v523
  %v544 = vpack.c.b16 %v526, %v525
  %v545 = vpack.c.b16 %v528, %v527
  %v546 = vpack.c.b16 %v530, %v529
  %563 = vmatpush.bf16.msra.mxu0 %v538
  %564 = vmatpush.bf16.msra.mxu0 %v537
  %565 = vmatpush.bf16.msra.mxu0 %v536
  %566 = vmatpush.bf16.msra.mxu0 %v535
  %567 = vmatpush.bf16.msra.mxu0 %v534
  %568 = vmatpush.bf16.msra.mxu0 %v533
  %569 = vmatpush.bf16.msra.mxu0 %v532
  %570 = vmatpush.bf16.msra.mxu0 %v531
  %571 = vmatmul.bf16.gmra.mxu0 %v444
  %v572 = vpop.f32.mrf.mxu0
  %v573 = vadd.f32 %v465, %v572
  %v574 = vpop.f32.mrf.mxu0
  %v575 = vadd.f32 %v465, %v574
  %576 = vmatmul.bf16.gmra.mxu0 %v446
  %v577 = vpop.f32.mrf.mxu0
  %v578 = vadd.f32 %v465, %v577
  %v579 = vpop.f32.mrf.mxu0
  %v580 = vadd.f32 %v465, %v579
  %581 = vmatmul.bf16.gmra.mxu0 %v448
  %v582 = vpop.f32.mrf.mxu0
  %v583 = vadd.f32 %v465, %v582
  %v584 = vpop.f32.mrf.mxu0
  %v585 = vadd.f32 %v465, %v584
  %586 = vmatmul.bf16.gmra.mxu0 %v450
  %v587 = vpop.f32.mrf.mxu0
  %v588 = vadd.f32 %v465, %v587
  %v589 = vpop.f32.mrf.mxu0
  %v590 = vadd.f32 %v465, %v589
  %591 = vmatmul.bf16.gmra.mxu0 %v452
  %v592 = vpop.f32.mrf.mxu0
  %v593 = vadd.f32 %v465, %v592
  %v594 = vpop.f32.mrf.mxu0
  %v595 = vadd.f32 %v465, %v594
  %596 = vmatmul.bf16.gmra.mxu0 %v454
  %v597 = vpop.f32.mrf.mxu0
  %v598 = vadd.f32 %v465, %v597
  %v599 = vpop.f32.mrf.mxu0
  %v600 = vadd.f32 %v465, %v599
  %601 = vmatmul.bf16.gmra.mxu0 %v456
  %v602 = vpop.f32.mrf.mxu0
  %v603 = vadd.f32 %v465, %v602
  %v604 = vpop.f32.mrf.mxu0
  %v605 = vadd.f32 %v465, %v604
  %606 = vmatmul.bf16.gmra.mxu0 %v458
  %v607 = vpop.f32.mrf.mxu0
  %v608 = vadd.f32 %v465, %v607
  %v609 = vpop.f32.mrf.mxu0
  %v610 = vadd.f32 %v465, %v609
  %611 = vmatmul.bf16.gmra.mxu0 %v460
  %v612 = vpop.f32.mrf.mxu0
  %v613 = vadd.f32 %v465, %v612
  %v614 = vpop.f32.mrf.mxu0
  %v615 = vadd.f32 %v465, %v614
  %616 = vmatmul.bf16.gmra.mxu0 %v462
  %v617 = vpop.f32.mrf.mxu0
  %v618 = vadd.f32 %v465, %v617
  %v619 = vpop.f32.mrf.mxu0
  %620 = vdwg.mxu0
  %621 = vmatpush.bf16.msra.mxu0 %v546
  %622 = vmatpush.bf16.msra.mxu0 %v545
  %623 = vmatpush.bf16.msra.mxu0 %v544
  %624 = vmatpush.bf16.msra.mxu0 %v543
  %625 = vmatpush.bf16.msra.mxu0 %v542
  %626 = vmatpush.bf16.msra.mxu0 %v541
  %627 = vmatpush.bf16.msra.mxu0 %v540
  %628 = vmatpush.bf16.msra.mxu0 %v539
  %629 = vmatmul.bf16.gmra.mxu0 %v445
  %v630 = vpop.f32.mrf.mxu0
  %v631 = vadd.f32 %v573, %v630
  %v632 = vpop.f32.mrf.mxu0
  %v633 = vadd.f32 %v575, %v632
  %634 = vmatmul.bf16.gmra.mxu0 %v447
  %v635 = vpop.f32.mrf.mxu0
  %v636 = vadd.f32 %v578, %v635
  %v637 = vpop.f32.mrf.mxu0
  %v638 = vadd.f32 %v580, %v637
  %639 = vmatmul.bf16.gmra.mxu0 %v449
  %v640 = vpop.f32.mrf.mxu0
  %v641 = vadd.f32 %v583, %v640
  %v642 = vpop.f32.mrf.mxu0
  %v643 = vadd.f32 %v585, %v642
  %644 = vmatmul.bf16.gmra.mxu0 %v451
  %v645 = vpop.f32.mrf.mxu0
  %v646 = vadd.f32 %v588, %v645
  %v647 = vpop.f32.mrf.mxu0
  %v648 = vadd.f32 %v590, %v647
  %649 = vmatmul.bf16.gmra.mxu0 %v453
  %v650 = vpop.f32.mrf.mxu0
  %v651 = vadd.f32 %v593, %v650
  %v652 = vpop.f32.mrf.mxu0
  %v653 = vadd.f32 %v595, %v652
  %654 = vmatmul.bf16.gmra.mxu0 %v455
  %v655 = vpop.f32.mrf.mxu0
  %v656 = vadd.f32 %v598, %v655
  %v657 = vpop.f32.mrf.mxu0
  %v658 = vadd.f32 %v600, %v657
  %659 = vmatmul.bf16.gmra.mxu0 %v457
  %v660 = vpop.f32.mrf.mxu0
  %v661 = vadd.f32 %v603, %v660
  %v662 = vpop.f32.mrf.mxu0
  %v663 = vadd.f32 %v605, %v662
  %664 = vmatmul.bf16.gmra.mxu0 %v459
  %v665 = vpop.f32.mrf.mxu0
  %v666 = vadd.f32 %v608, %v665
  %v667 = vpop.f32.mrf.mxu0
  %v668 = vadd.f32 %v610, %v667
  %669 = vmatmul.bf16.gmra.mxu0 %v461
  %v670 = vpop.f32.mrf.mxu0
  %v671 = vadd.f32 %v613, %v670
  %v672 = vpop.f32.mrf.mxu0
  %v673 = vadd.f32 %v615, %v672
  %674 = vmatmul.bf16.gmra.mxu0 %v463
  %v675 = vpop.f32.mrf.mxu0
  %v676 = vadd.f32 %v618, %v675
  %v677 = vpop.f32.mrf.mxu0
  %678 = vdwg.mxu0
  %vm679 = vcmp.gt.f32.partialorder %v631, 0.0
  %vm680 = vcmp.gt.f32.partialorder %v633, 0.0
  %vm681 = vcmp.gt.f32.partialorder %v636, 0.0
  %vm682 = vcmp.gt.f32.partialorder %v638, 0.0
  %vm683 = vcmp.gt.f32.partialorder %v641, 0.0
  %vm684 = vcmp.gt.f32.partialorder %v643, 0.0
  %vm685 = vcmp.gt.f32.partialorder %v646, 0.0
  %vm686 = vcmp.gt.f32.partialorder %v648, 0.0
  %vm687 = vcmp.gt.f32.partialorder %v651, 0.0
  %vm688 = vcmp.gt.f32.partialorder %v653, 0.0
  %vm689 = vcmp.gt.f32.partialorder %v656, 0.0
  %vm690 = vcmp.gt.f32.partialorder %v658, 0.0
  %vm691 = vcmp.gt.f32.partialorder %v661, 0.0
  %vm692 = vcmp.gt.f32.partialorder %v663, 0.0
  %vm693 = vcmp.gt.f32.partialorder %v666, 0.0
  %vm694 = vcmp.gt.f32.partialorder %v668, 0.0
  %vm695 = vcmp.gt.f32.partialorder %v671, 0.0
  %vm696 = vcmp.gt.f32.partialorder %v673, 0.0
  %vm697 = vcmp.gt.f32.partialorder %v676, 0.0
  %v698 = vmul.f32 %v631, 0.01
  %v699 = vmul.f32 %v633, 0.01
  %v700 = vmul.f32 %v636, 0.01
  %v701 = vmul.f32 %v638, 0.01
  %v702 = vmul.f32 %v641, 0.01
  %v703 = vmul.f32 %v643, 0.01
  %v704 = vmul.f32 %v646, 0.01
  %v705 = vmul.f32 %v648, 0.01
  %v706 = vmul.f32 %v651, 0.01
  %v707 = vmul.f32 %v653, 0.01
  %v708 = vmul.f32 %v656, 0.01
  %v709 = vmul.f32 %v658, 0.01
  %v710 = vmul.f32 %v661, 0.01
  %v711 = vmul.f32 %v663, 0.01
  %v712 = vmul.f32 %v666, 0.01
  %v713 = vmul.f32 %v668, 0.01
  %v714 = vmul.f32 %v671, 0.01
  %v715 = vmul.f32 %v673, 0.01
  %v716 = vmul.f32 %v676, 0.01
  %v717 = vsel %vm679, %v631, %v698
  %v718 = vsel %vm680, %v633, %v699
  %v719 = vsel %vm681, %v636, %v700
  %v720 = vsel %vm682, %v638, %v701
  %v721 = vsel %vm683, %v641, %v702
  %v722 = vsel %vm684, %v643, %v703
  %v723 = vsel %vm685, %v646, %v704
  %v724 = vsel %vm686, %v648, %v705
  %v725 = vsel %vm687, %v651, %v706
  %v726 = vsel %vm688, %v653, %v707
  %v727 = vsel %vm689, %v656, %v708
  %v728 = vsel %vm690, %v658, %v709
  %v729 = vsel %vm691, %v661, %v710
  %v730 = vsel %vm692, %v663, %v711
  %v731 = vsel %vm693, %v666, %v712
  %v732 = vsel %vm694, %v668, %v713
  %v733 = vsel %vm695, %v671, %v714
  %v734 = vsel %vm696, %v673, %v715
  %v735 = vsel %vm697, %v676, %v716
  %v736 = vpack.c.bf16 %v718, %v717
  %v737 = vpack.c.bf16 %v720, %v719
  %v738 = vpack.c.bf16 %v722, %v721
  %v739 = vpack.c.bf16 %v724, %v723
  %v740 = vpack.c.bf16 %v726, %v725
  %v741 = vpack.c.bf16 %v728, %v727
  %v742 = vpack.c.bf16 %v730, %v729
  %v743 = vpack.c.bf16 %v732, %v731
  %v744 = vpack.c.bf16 %v734, %v733
  %v745 = vpack.c.bf16 %v735, %v735
  %v747 = vperm.slane %v91, 0
  %v765 = vunpack.c.l.b16 %v75
  %v766 = vunpack.c.l.b16 %v76
  %v767 = vunpack.c.l.b16 %v77
  %v768 = vunpack.c.l.b16 %v78
  %v769 = vunpack.c.l.b16 %v79
  %v770 = vunpack.c.l.b16 %v80
  %v771 = vunpack.c.l.b16 %v81
  %v772 = vunpack.c.l.b16 %v82
  %v773 = vunpack.c.l.b16 %v83
  %v774 = vunpack.c.l.b16 %v84
  %v775 = vunpack.c.l.b16 %v85
  %v776 = vunpack.c.l.b16 %v86
  %v777 = vunpack.c.l.b16 %v87
  %v778 = vunpack.c.l.b16 %v88
  %v779 = vunpack.c.l.b16 %v89
  %v780 = vunpack.c.l.b16 %v90
  %v781 = vpack.c.b16 %v766, %v765
  %v782 = vpack.c.b16 %v768, %v767
  %v783 = vpack.c.b16 %v770, %v769
  %v784 = vpack.c.b16 %v772, %v771
  %v785 = vpack.c.b16 %v774, %v773
  %v786 = vpack.c.b16 %v776, %v775
  %v787 = vpack.c.b16 %v778, %v777
  %v788 = vpack.c.b16 %v780, %v779
  %797 = vmatpush.bf16.msra.mxu0 %v788
  %798 = vmatpush.bf16.msra.mxu0 %v787
  %799 = vmatpush.bf16.msra.mxu0 %v786
  %800 = vmatpush.bf16.msra.mxu0 %v785
  %801 = vmatpush.bf16.msra.mxu0 %v784
  %802 = vmatpush.bf16.msra.mxu0 %v783
  %803 = vmatpush.bf16.msra.mxu0 %v782
  %804 = vmatpush.bf16.msra.mxu0 %v781
  %805 = vmatmul.bf16.gmra.mxu0 %v736
  %v806 = vpop.f32.mrf.mxu0
  %v807 = vadd.f32 %v747, %v806
  %v808 = vpop.f32.mrf.mxu0
  %v809 = vadd.f32 %v747, %v808
  %810 = vmatmul.bf16.gmra.mxu0 %v737
  %v811 = vpop.f32.mrf.mxu0
  %v812 = vadd.f32 %v747, %v811
  %v813 = vpop.f32.mrf.mxu0
  %v814 = vadd.f32 %v747, %v813
  %815 = vmatmul.bf16.gmra.mxu0 %v738
  %v816 = vpop.f32.mrf.mxu0
  %v817 = vadd.f32 %v747, %v816
  %v818 = vpop.f32.mrf.mxu0
  %v819 = vadd.f32 %v747, %v818
  %820 = vmatmul.bf16.gmra.mxu0 %v739
  %v821 = vpop.f32.mrf.mxu0
  %v822 = vadd.f32 %v747, %v821
  %v823 = vpop.f32.mrf.mxu0
  %v824 = vadd.f32 %v747, %v823
  %825 = vmatmul.bf16.gmra.mxu0 %v740
  %v826 = vpop.f32.mrf.mxu0
  %v827 = vadd.f32 %v747, %v826
  %v828 = vpop.f32.mrf.mxu0
  %v829 = vadd.f32 %v747, %v828
  %830 = vmatmul.bf16.gmra.mxu0 %v741
  %v831 = vpop.f32.mrf.mxu0
  %v832 = vadd.f32 %v747, %v831
  %v833 = vpop.f32.mrf.mxu0
  %v834 = vadd.f32 %v747, %v833
  %835 = vmatmul.bf16.gmra.mxu0 %v742
  %v836 = vpop.f32.mrf.mxu0
  %v837 = vadd.f32 %v747, %v836
  %v838 = vpop.f32.mrf.mxu0
  %v839 = vadd.f32 %v747, %v838
  %840 = vmatmul.bf16.gmra.mxu0 %v743
  %v841 = vpop.f32.mrf.mxu0
  %v842 = vadd.f32 %v747, %v841
  %v843 = vpop.f32.mrf.mxu0
  %v844 = vadd.f32 %v747, %v843
  %845 = vmatmul.bf16.gmra.mxu0 %v744
  %v846 = vpop.f32.mrf.mxu0
  %v847 = vadd.f32 %v747, %v846
  %v848 = vpop.f32.mrf.mxu0
  %v849 = vadd.f32 %v747, %v848
  %850 = vmatmul.bf16.gmra.mxu0 %v745
  %v851 = vpop.f32.mrf.mxu0
  %v852 = vadd.f32 %v747, %v851
  %v853 = vpop.f32.mrf.mxu0
  %854 = vdwg.mxu0
  %vm855 = vcmp.gt.f32.partialorder %v807, 0.0
  %vm856 = vcmp.gt.f32.partialorder %v809, 0.0
  %vm857 = vcmp.gt.f32.partialorder %v812, 0.0
  %vm858 = vcmp.gt.f32.partialorder %v814, 0.0
  %vm859 = vcmp.gt.f32.partialorder %v817, 0.0
  %vm860 = vcmp.gt.f32.partialorder %v819, 0.0
  %vm861 = vcmp.gt.f32.partialorder %v822, 0.0
  %vm862 = vcmp.gt.f32.partialorder %v824, 0.0
  %vm863 = vcmp.gt.f32.partialorder %v827, 0.0
  %vm864 = vcmp.gt.f32.partialorder %v829, 0.0
  %vm865 = vcmp.gt.f32.partialorder %v832, 0.0
  %vm866 = vcmp.gt.f32.partialorder %v834, 0.0
  %vm867 = vcmp.gt.f32.partialorder %v837, 0.0
  %vm868 = vcmp.gt.f32.partialorder %v839, 0.0
  %vm869 = vcmp.gt.f32.partialorder %v842, 0.0
  %vm870 = vcmp.gt.f32.partialorder %v844, 0.0
  %vm871 = vcmp.gt.f32.partialorder %v847, 0.0
  %vm872 = vcmp.gt.f32.partialorder %v849, 0.0
  %vm873 = vcmp.gt.f32.partialorder %v852, 0.0
  %v874 = vmul.f32 %v807, 0.01
  %v875 = vmul.f32 %v809, 0.01
  %v876 = vmul.f32 %v812, 0.01
  %v877 = vmul.f32 %v814, 0.01
  %v878 = vmul.f32 %v817, 0.01
  %v879 = vmul.f32 %v819, 0.01
  %v880 = vmul.f32 %v822, 0.01
  %v881 = vmul.f32 %v824, 0.01
  %v882 = vmul.f32 %v827, 0.01
  %v883 = vmul.f32 %v829, 0.01
  %v884 = vmul.f32 %v832, 0.01
  %v885 = vmul.f32 %v834, 0.01
  %v886 = vmul.f32 %v837, 0.01
  %v887 = vmul.f32 %v839, 0.01
  %v888 = vmul.f32 %v842, 0.01
  %v889 = vmul.f32 %v844, 0.01
  %v890 = vmul.f32 %v847, 0.01
  %v891 = vmul.f32 %v849, 0.01
  %v892 = vmul.f32 %v852, 0.01
  %v893 = vsel %vm855, %v807, %v874
  %v894 = vsel %vm856, %v809, %v875
  %v895 = vsel %vm857, %v812, %v876
  %v896 = vsel %vm858, %v814, %v877
  %v897 = vsel %vm859, %v817, %v878
  %v898 = vsel %vm860, %v819, %v879
  %v899 = vsel %vm861, %v822, %v880
  %v900 = vsel %vm862, %v824, %v881
  %v901 = vsel %vm863, %v827, %v882
  %v902 = vsel %vm864, %v829, %v883
  %v903 = vsel %vm865, %v832, %v884
  %v904 = vsel %vm866, %v834, %v885
  %v905 = vsel %vm867, %v837, %v886
  %v906 = vsel %vm868, %v839, %v887
  %v907 = vsel %vm869, %v842, %v888
  %v908 = vsel %vm870, %v844, %v889
  %v909 = vsel %vm871, %v847, %v890
  %v910 = vsel %vm872, %v849, %v891
  %v911 = vsel %vm873, %v852, %v892
  %v912 = vpack.c.bf16 %v894, %v893
  %v913 = vpack.c.bf16 %v896, %v895
  %v914 = vpack.c.bf16 %v898, %v897
  %v915 = vpack.c.bf16 %v900, %v899
  %v916 = vpack.c.bf16 %v902, %v901
  %v917 = vpack.c.bf16 %v904, %v903
  %v918 = vpack.c.bf16 %v906, %v905
  %v919 = vpack.c.bf16 %v908, %v907
  %v920 = vpack.c.bf16 %v910, %v909
  %v921 = vpack.c.bf16 %v911, %v911
  %v923 = vperm.slane %v108, 0
  %v941 = vunpack.c.l.b16 %v92
  %v942 = vunpack.c.l.b16 %v93
  %v943 = vunpack.c.l.b16 %v94
  %v944 = vunpack.c.l.b16 %v95
  %v945 = vunpack.c.l.b16 %v96
  %v946 = vunpack.c.l.b16 %v97
  %v947 = vunpack.c.l.b16 %v98
  %v948 = vunpack.c.l.b16 %v99
  %v949 = vunpack.c.l.b16 %v100
  %v950 = vunpack.c.l.b16 %v101
  %v951 = vunpack.c.l.b16 %v102
  %v952 = vunpack.c.l.b16 %v103
  %v953 = vunpack.c.l.b16 %v104
  %v954 = vunpack.c.l.b16 %v105
  %v955 = vunpack.c.l.b16 %v106
  %v956 = vunpack.c.l.b16 %v107
  %v957 = vpack.c.b16 %v942, %v941
  %v958 = vpack.c.b16 %v944, %v943
  %v959 = vpack.c.b16 %v946, %v945
  %v960 = vpack.c.b16 %v948, %v947
  %v961 = vpack.c.b16 %v950, %v949
  %v962 = vpack.c.b16 %v952, %v951
  %v963 = vpack.c.b16 %v954, %v953
  %v964 = vpack.c.b16 %v956, %v955
  %973 = vmatpush.bf16.msra.mxu0 %v964
  %974 = vmatpush.bf16.msra.mxu0 %v963
  %975 = vmatpush.bf16.msra.mxu0 %v962
  %976 = vmatpush.bf16.msra.mxu0 %v961
  %977 = vmatpush.bf16.msra.mxu0 %v960
  %978 = vmatpush.bf16.msra.mxu0 %v959
  %979 = vmatpush.bf16.msra.mxu0 %v958
  %980 = vmatpush.bf16.msra.mxu0 %v957
  %981 = vmatmul.bf16.gmra.mxu0 %v912
  %v982 = vpop.f32.mrf.mxu0
  %v983 = vadd.f32 %v923, %v982
  %v984 = vpop.f32.mrf.mxu0
  %v985 = vadd.f32 %v923, %v984
  %986 = vmatmul.bf16.gmra.mxu0 %v913
  %v987 = vpop.f32.mrf.mxu0
  %v988 = vadd.f32 %v923, %v987
  %v989 = vpop.f32.mrf.mxu0
  %v990 = vadd.f32 %v923, %v989
  %991 = vmatmul.bf16.gmra.mxu0 %v914
  %v992 = vpop.f32.mrf.mxu0
  %v993 = vadd.f32 %v923, %v992
  %v994 = vpop.f32.mrf.mxu0
  %v995 = vadd.f32 %v923, %v994
  %996 = vmatmul.bf16.gmra.mxu0 %v915
  %v997 = vpop.f32.mrf.mxu0
  %v998 = vadd.f32 %v923, %v997
  %v999 = vpop.f32.mrf.mxu0
  %v1000 = vadd.f32 %v923, %v999
  %1001 = vmatmul.bf16.gmra.mxu0 %v916
  %v1002 = vpop.f32.mrf.mxu0
  %v1003 = vadd.f32 %v923, %v1002
  %v1004 = vpop.f32.mrf.mxu0
  %v1005 = vadd.f32 %v923, %v1004
  %1006 = vmatmul.bf16.gmra.mxu0 %v917
  %v1007 = vpop.f32.mrf.mxu0
  %v1008 = vadd.f32 %v923, %v1007
  %v1009 = vpop.f32.mrf.mxu0
  %v1010 = vadd.f32 %v923, %v1009
  %1011 = vmatmul.bf16.gmra.mxu0 %v918
  %v1012 = vpop.f32.mrf.mxu0
  %v1013 = vadd.f32 %v923, %v1012
  %v1014 = vpop.f32.mrf.mxu0
  %v1015 = vadd.f32 %v923, %v1014
  %1016 = vmatmul.bf16.gmra.mxu0 %v919
  %v1017 = vpop.f32.mrf.mxu0
  %v1018 = vadd.f32 %v923, %v1017
  %v1019 = vpop.f32.mrf.mxu0
  %v1020 = vadd.f32 %v923, %v1019
  %1021 = vmatmul.bf16.gmra.mxu0 %v920
  %v1022 = vpop.f32.mrf.mxu0
  %v1023 = vadd.f32 %v923, %v1022
  %v1024 = vpop.f32.mrf.mxu0
  %v1025 = vadd.f32 %v923, %v1024
  %1026 = vmatmul.bf16.gmra.mxu0 %v921
  %v1027 = vpop.f32.mrf.mxu0
  %v1028 = vadd.f32 %v923, %v1027
  %v1029 = vpop.f32.mrf.mxu0
  %1030 = vdwg.mxu0
  %vm1031 = vcmp.gt.f32.partialorder %v983, 0.0
  %vm1032 = vcmp.gt.f32.partialorder %v985, 0.0
  %vm1033 = vcmp.gt.f32.partialorder %v988, 0.0
  %vm1034 = vcmp.gt.f32.partialorder %v990, 0.0
  %vm1035 = vcmp.gt.f32.partialorder %v993, 0.0
  %vm1036 = vcmp.gt.f32.partialorder %v995, 0.0
  %vm1037 = vcmp.gt.f32.partialorder %v998, 0.0
  %vm1038 = vcmp.gt.f32.partialorder %v1000, 0.0
  %vm1039 = vcmp.gt.f32.partialorder %v1003, 0.0
  %vm1040 = vcmp.gt.f32.partialorder %v1005, 0.0
  %vm1041 = vcmp.gt.f32.partialorder %v1008, 0.0
  %vm1042 = vcmp.gt.f32.partialorder %v1010, 0.0
  %vm1043 = vcmp.gt.f32.partialorder %v1013, 0.0
  %vm1044 = vcmp.gt.f32.partialorder %v1015, 0.0
  %vm1045 = vcmp.gt.f32.partialorder %v1018, 0.0
  %vm1046 = vcmp.gt.f32.partialorder %v1020, 0.0
  %vm1047 = vcmp.gt.f32.partialorder %v1023, 0.0
  %vm1048 = vcmp.gt.f32.partialorder %v1025, 0.0
  %vm1049 = vcmp.gt.f32.partialorder %v1028, 0.0
  %v1050 = vmul.f32 %v983, 0.01
  %v1051 = vmul.f32 %v985, 0.01
  %v1052 = vmul.f32 %v988, 0.01
  %v1053 = vmul.f32 %v990, 0.01
  %v1054 = vmul.f32 %v993, 0.01
  %v1055 = vmul.f32 %v995, 0.01
  %v1056 = vmul.f32 %v998, 0.01
  %v1057 = vmul.f32 %v1000, 0.01
  %v1058 = vmul.f32 %v1003, 0.01
  %v1059 = vmul.f32 %v1005, 0.01
  %v1060 = vmul.f32 %v1008, 0.01
  %v1061 = vmul.f32 %v1010, 0.01
  %v1062 = vmul.f32 %v1013, 0.01
  %v1063 = vmul.f32 %v1015, 0.01
  %v1064 = vmul.f32 %v1018, 0.01
  %v1065 = vmul.f32 %v1020, 0.01
  %v1066 = vmul.f32 %v1023, 0.01
  %v1067 = vmul.f32 %v1025, 0.01
  %v1068 = vmul.f32 %v1028, 0.01
  %v1069 = vsel %vm1031, %v983, %v1050
  %v1070 = vsel %vm1032, %v985, %v1051
  %v1071 = vsel %vm1033, %v988, %v1052
  %v1072 = vsel %vm1034, %v990, %v1053
  %v1073 = vsel %vm1035, %v993, %v1054
  %v1074 = vsel %vm1036, %v995, %v1055
  %v1075 = vsel %vm1037, %v998, %v1056
  %v1076 = vsel %vm1038, %v1000, %v1057
  %v1077 = vsel %vm1039, %v1003, %v1058
  %v1078 = vsel %vm1040, %v1005, %v1059
  %v1079 = vsel %vm1041, %v1008, %v1060
  %v1080 = vsel %vm1042, %v1010, %v1061
  %v1081 = vsel %vm1043, %v1013, %v1062
  %v1082 = vsel %vm1044, %v1015, %v1063
  %v1083 = vsel %vm1045, %v1018, %v1064
  %v1084 = vsel %vm1046, %v1020, %v1065
  %v1085 = vsel %vm1047, %v1023, %v1066
  %v1086 = vsel %vm1048, %v1025, %v1067
  %v1087 = vsel %vm1049, %v1028, %v1068
  %1088 = vmax.xlane.f32.xlu0 %v1069
  %v1089 = vpop.xlane.xlu0 %1088
  %1090 = vmax.xlane.f32.xlu0 %v1070
  %v1091 = vpop.xlane.xlu0 %1090
  %1092 = vmax.xlane.f32.xlu0 %v1071
  %v1093 = vpop.xlane.xlu0 %1092
  %1094 = vmax.xlane.f32.xlu0 %v1072
  %v1095 = vpop.xlane.xlu0 %1094
  %1096 = vmax.xlane.f32.xlu0 %v1073
  %v1097 = vpop.xlane.xlu0 %1096
  %1098 = vmax.xlane.f32.xlu0 %v1074
  %v1099 = vpop.xlane.xlu0 %1098
  %1100 = vmax.xlane.f32.xlu0 %v1075
  %v1101 = vpop.xlane.xlu0 %1100
  %1102 = vmax.xlane.f32.xlu0 %v1076
  %v1103 = vpop.xlane.xlu0 %1102
  %1104 = vmax.xlane.f32.xlu0 %v1077
  %v1105 = vpop.xlane.xlu0 %1104
  %1106 = vmax.xlane.f32.xlu0 %v1078
  %v1107 = vpop.xlane.xlu0 %1106
  %1108 = vmax.xlane.f32.xlu0 %v1079
  %v1109 = vpop.xlane.xlu0 %1108
  %1110 = vmax.xlane.f32.xlu0 %v1080
  %v1111 = vpop.xlane.xlu0 %1110
  %1112 = vmax.xlane.f32.xlu0 %v1081
  %v1113 = vpop.xlane.xlu0 %1112
  %1114 = vmax.xlane.f32.xlu0 %v1082
  %v1115 = vpop.xlane.xlu0 %1114
  %1116 = vmax.xlane.f32.xlu0 %v1083
  %v1117 = vpop.xlane.xlu0 %1116
  %1118 = vmax.xlane.f32.xlu0 %v1084
  %v1119 = vpop.xlane.xlu0 %1118
  %1120 = vmax.xlane.f32.xlu0 %v1085
  %v1121 = vpop.xlane.xlu0 %1120
  %1122 = vmax.xlane.f32.xlu0 %v1086
  %v1123 = vpop.xlane.xlu0 %1122
  %1124 = vmax.xlane.f32.xlu0 %v1087
  %v1125 = vpop.xlane.xlu0 %1124
  %v1126 = vsub.f32 %v1069, %v1089
  %v1127 = vsub.f32 %v1070, %v1091
  %v1128 = vsub.f32 %v1071, %v1093
  %v1129 = vsub.f32 %v1072, %v1095
  %v1130 = vsub.f32 %v1073, %v1097
  %v1131 = vsub.f32 %v1074, %v1099
  %v1132 = vsub.f32 %v1075, %v1101
  %v1133 = vsub.f32 %v1076, %v1103
  %v1134 = vsub.f32 %v1077, %v1105
  %v1135 = vsub.f32 %v1078, %v1107
  %v1136 = vsub.f32 %v1079, %v1109
  %v1137 = vsub.f32 %v1080, %v1111
  %v1138 = vsub.f32 %v1081, %v1113
  %v1139 = vsub.f32 %v1082, %v1115
  %v1140 = vsub.f32 %v1083, %v1117
  %v1141 = vsub.f32 %v1084, %v1119
  %v1142 = vsub.f32 %v1085, %v1121
  %v1143 = vsub.f32 %v1086, %v1123
  %v1144 = vsub.f32 %v1087, %v1125
  %v1145 = vmul.f32 %v1126, 1.442695
  %v1146 = vpow.pop %v1145
  %v1147 = vmul.f32 %v1127, 1.442695
  %v1148 = vpow.pop %v1147
  %v1149 = vmul.f32 %v1128, 1.442695
  %v1150 = vpow.pop %v1149
  %v1151 = vmul.f32 %v1129, 1.442695
  %v1152 = vpow.pop %v1151
  %v1153 = vmul.f32 %v1130, 1.442695
  %v1154 = vpow.pop %v1153
  %v1155 = vmul.f32 %v1131, 1.442695
  %v1156 = vpow.pop %v1155
  %v1157 = vmul.f32 %v1132, 1.442695
  %v1158 = vpow.pop %v1157
  %v1159 = vmul.f32 %v1133, 1.442695
  %v1160 = vpow.pop %v1159
  %v1161 = vmul.f32 %v1134, 1.442695
  %v1162 = vpow.pop %v1161
  %v1163 = vmul.f32 %v1135, 1.442695
  %v1164 = vpow.pop %v1163
  %v1165 = vmul.f32 %v1136, 1.442695
  %v1166 = vpow.pop %v1165
  %v1167 = vmul.f32 %v1137, 1.442695
  %v1168 = vpow.pop %v1167
  %v1169 = vmul.f32 %v1138, 1.442695
  %v1170 = vpow.pop %v1169
  %v1171 = vmul.f32 %v1139, 1.442695
  %v1172 = vpow.pop %v1171
  %v1173 = vmul.f32 %v1140, 1.442695
  %v1174 = vpow.pop %v1173
  %v1175 = vmul.f32 %v1141, 1.442695
  %v1176 = vpow.pop %v1175
  %v1177 = vmul.f32 %v1142, 1.442695
  %v1178 = vpow.pop %v1177
  %v1179 = vmul.f32 %v1143, 1.442695
  %v1180 = vpow.pop %v1179
  %v1181 = vmul.f32 %v1144, 1.442695
  %v1182 = vpow.pop %v1181
  %1183 = vadd.xlane.f32.xlu0 %v1146
  %v1184 = vpop.xlane.xlu0 %1183
  %1185 = vadd.xlane.f32.xlu0 %v1148
  %v1186 = vpop.xlane.xlu0 %1185
  %1187 = vadd.xlane.f32.xlu0 %v1150
  %v1188 = vpop.xlane.xlu0 %1187
  %1189 = vadd.xlane.f32.xlu0 %v1152
  %v1190 = vpop.xlane.xlu0 %1189
  %1191 = vadd.xlane.f32.xlu0 %v1154
  %v1192 = vpop.xlane.xlu0 %1191
  %1193 = vadd.xlane.f32.xlu0 %v1156
  %v1194 = vpop.xlane.xlu0 %1193
  %1195 = vadd.xlane.f32.xlu0 %v1158
  %v1196 = vpop.xlane.xlu0 %1195
  %1197 = vadd.xlane.f32.xlu0 %v1160
  %v1198 = vpop.xlane.xlu0 %1197
  %1199 = vadd.xlane.f32.xlu0 %v1162
  %v1200 = vpop.xlane.xlu0 %1199
  %1201 = vadd.xlane.f32.xlu0 %v1164
  %v1202 = vpop.xlane.xlu0 %1201
  %1203 = vadd.xlane.f32.xlu0 %v1166
  %v1204 = vpop.xlane.xlu0 %1203
  %1205 = vadd.xlane.f32.xlu0 %v1168
  %v1206 = vpop.xlane.xlu0 %1205
  %1207 = vadd.xlane.f32.xlu0 %v1170
  %v1208 = vpop.xlane.xlu0 %1207
  %1209 = vadd.xlane.f32.xlu0 %v1172
  %v1210 = vpop.xlane.xlu0 %1209
  %1211 = vadd.xlane.f32.xlu0 %v1174
  %v1212 = vpop.xlane.xlu0 %1211
  %1213 = vadd.xlane.f32.xlu0 %v1176
  %v1214 = vpop.xlane.xlu0 %1213
  %1215 = vadd.xlane.f32.xlu0 %v1178
  %v1216 = vpop.xlane.xlu0 %1215
  %1217 = vadd.xlane.f32.xlu0 %v1180
  %v1218 = vpop.xlane.xlu0 %1217
  %1219 = vadd.xlane.f32.xlu0 %v1182
  %v1220 = vpop.xlane.xlu0 %1219
  %v1221 = vrcp.pop %v1184
  %v1222 = vrcp.pop %v1186
  %v1223 = vrcp.pop %v1188
  %v1224 = vrcp.pop %v1190
  %v1225 = vrcp.pop %v1192
  %v1226 = vrcp.pop %v1194
  %v1227 = vrcp.pop %v1196
  %v1228 = vrcp.pop %v1198
  %v1229 = vrcp.pop %v1200
  %v1230 = vrcp.pop %v1202
  %v1231 = vrcp.pop %v1204
  %v1232 = vrcp.pop %v1206
  %v1233 = vrcp.pop %v1208
  %v1234 = vrcp.pop %v1210
  %v1235 = vrcp.pop %v1212
  %v1236 = vrcp.pop %v1214
  %v1237 = vrcp.pop %v1216
  %v1238 = vrcp.pop %v1218
  %v1239 = vrcp.pop %v1220
  %v1240 = vmul.f32 %v1146, %v1221
  %v1241 = vmul.f32 %v1148, %v1222
  %v1242 = vmul.f32 %v1150, %v1223
  %v1243 = vmul.f32 %v1152, %v1224
  %v1244 = vmul.f32 %v1154, %v1225
  %v1245 = vmul.f32 %v1156, %v1226
  %v1246 = vmul.f32 %v1158, %v1227
  %v1247 = vmul.f32 %v1160, %v1228
  %v1248 = vmul.f32 %v1162, %v1229
  %v1249 = vmul.f32 %v1164, %v1230
  %v1250 = vmul.f32 %v1166, %v1231
  %v1251 = vmul.f32 %v1168, %v1232
  %v1252 = vmul.f32 %v1170, %v1233
  %v1253 = vmul.f32 %v1172, %v1234
  %v1254 = vmul.f32 %v1174, %v1235
  %v1255 = vmul.f32 %v1176, %v1236
  %v1256 = vmul.f32 %v1178, %v1237
  %v1257 = vmul.f32 %v1180, %v1238
  %v1258 = vmul.f32 %v1182, %v1239
  %v1259 = vpack.c.bf16 %v1240, %v1240
  %v1260 = vpack.c.bf16 %v1241, %v1241
  %v1261 = vpack.c.bf16 %v1242, %v1242
  %v1262 = vpack.c.bf16 %v1243, %v1243
  %v1263 = vpack.c.bf16 %v1244, %v1244
  %v1264 = vpack.c.bf16 %v1245, %v1245
  %v1265 = vpack.c.bf16 %v1246, %v1246
  %v1266 = vpack.c.bf16 %v1247, %v1247
  %v1267 = vpack.c.bf16 %v1248, %v1248
  %v1268 = vpack.c.bf16 %v1249, %v1249
  %v1269 = vpack.c.bf16 %v1250, %v1250
  %v1270 = vpack.c.bf16 %v1251, %v1251
  %v1271 = vpack.c.bf16 %v1252, %v1252
  %v1272 = vpack.c.bf16 %v1253, %v1253
  %v1273 = vpack.c.bf16 %v1254, %v1254
  %v1274 = vpack.c.bf16 %v1255, %v1255
  %v1275 = vpack.c.bf16 %v1256, %v1256
  %v1276 = vpack.c.bf16 %v1257, %v1257
  %v1277 = vpack.c.bf16 %v1258, %v1258
  %1278 = vst [vmem:[%s9] sm:$0xf] %v1259
  %1279 = vst [vmem:[%s9 + $0x4] sm:$0xf] %v1260
  %1280 = vst [vmem:[%s9 + $0x8] sm:$0xf] %v1261
  %1281 = vst [vmem:[%s9 + $0xc] sm:$0xf] %v1262
  %1282 = vst [vmem:[%s9 + $0x10] sm:$0xf] %v1263
  %1283 = vst [vmem:[%s9 + $0x14] sm:$0xf] %v1264
  %1284 = vst [vmem:[%s9 + $0x18] sm:$0xf] %v1265
  %1285 = vst [vmem:[%s9 + $0x1c] sm:$0xf] %v1266
  %1286 = vst [vmem:[%s9 + $0x20] sm:$0xf] %v1267
  %1287 = vst [vmem:[%s9 + $0x24] sm:$0xf] %v1268
  %1288 = vst [vmem:[%s9 + $0x28] sm:$0xf] %v1269
  %1289 = vst [vmem:[%s9 + $0x2c] sm:$0xf] %v1270
  %1290 = vst [vmem:[%s9 + $0x30] sm:$0xf] %v1271
  %1291 = vst [vmem:[%s9 + $0x34] sm:$0xf] %v1272
  %1292 = vst [vmem:[%s9 + $0x38] sm:$0xf] %v1273
  %1293 = vst [vmem:[%s9 + $0x3c] sm:$0xf] %v1274
  %1294 = vst [vmem:[%s9 + $0x40] sm:$0xf] %v1275
  %1295 = vst [vmem:[%s9 + $0x44] sm:$0xf] %v1276
  %1296 = vst [vmem:[%s9 + $0x48] sm:$0xf] %v1277
  %v1297 = vld [vmem:[%s0 + $0x98] sm:$0xff]
  %v1298 = vld [vmem:[%s0 + $0xa0] sm:$0xff]
  %v1299 = vld [vmem:[%s0 + $0xa8] sm:$0xff]
  %v1300 = vld [vmem:[%s0 + $0xb0] sm:$0xff]
  %v1301 = vld [vmem:[%s0 + $0xb8] sm:$0xff]
  %v1302 = vld [vmem:[%s0 + $0xc0] sm:$0xff]
  %v1303 = vld [vmem:[%s0 + $0xc8] sm:$0xff]
  %v1304 = vld [vmem:[%s0 + $0xd0] sm:$0xff]
  %v1305 = vld [vmem:[%s0 + $0xd8] sm:$0xff]
  %v1306 = vld [vmem:[%s0 + $0xe0] sm:$0xff]
  %v1307 = vld [vmem:[%s0 + $0xe8] sm:$0xff]
  %v1308 = vld [vmem:[%s0 + $0xf0] sm:$0xff]
  %v1309 = vld [vmem:[%s0 + $0xf8] sm:$0xff]
  %v1310 = vld [vmem:[%s0 + $0x100] sm:$0xff]
  %v1311 = vld [vmem:[%s0 + $0x108] sm:$0xff]
  %v1312 = vld [vmem:[%s0 + $0x110] sm:$0xff]
  %v1313 = vld [vmem:[%s0 + $0x118] sm:$0xff]
  %v1314 = vld [vmem:[%s0 + $0x120] sm:$0xff]
  %v1315 = vld [vmem:[%s0 + $0x128] sm:$0xff]
  %v1316 = vpack.c.bf16 %v1298, %v1297
  %v1317 = vpack.c.bf16 %v1300, %v1299
  %v1318 = vpack.c.bf16 %v1302, %v1301
  %v1319 = vpack.c.bf16 %v1304, %v1303
  %v1320 = vpack.c.bf16 %v1306, %v1305
  %v1321 = vpack.c.bf16 %v1308, %v1307
  %v1322 = vpack.c.bf16 %v1310, %v1309
  %v1323 = vpack.c.bf16 %v1312, %v1311
  %v1324 = vpack.c.bf16 %v1314, %v1313
  %v1325 = vpack.c.bf16 %v1315, %v1315
  %v1327 = vsel %vm183, %v1316, 0
  %v1330 = vsel %vm183, %v1317, 0
  %v1333 = vsel %vm183, %v1318, 0
  %v1336 = vsel %vm183, %v1319, 0
  %v1339 = vsel %vm183, %v1320, 0
  %v1342 = vsel %vm183, %v1321, 0
  %v1345 = vsel %vm183, %v1322, 0
  %v1348 = vsel %vm183, %v1323, 0
  %v1351 = vsel %vm183, %v1324, 0
  %v1354 = vsel %vm183, %v1325, 0
  %1356 = vmatpush.bf16.msra.mxu0 0
  %1357 = vmatpush.bf16.msra.mxu0 0
  %1358 = vmatpush.bf16.msra.mxu0 0
  %1359 = vmatpush.bf16.msra.mxu0 0
  %1360 = vmatpush.bf16.msra.mxu0 %v173
  %1361 = vmatpush.bf16.msra.mxu0 %v171
  %1362 = vmatpush.bf16.msra.mxu0 %v169
  %1363 = vmatpush.bf16.msra.mxu0 %v167
  %1364 = vmatmul.bf16.gmra.mxu0 %v1327
  %v1365 = vpop.f32.mrf.mxu0
  %v1366 = vadd.f32 %v139, %v1365
  %v1367 = vpop.f32.mrf.mxu0
  %v1368 = vadd.f32 %v139, %v1367
  %1369 = vmatmul.bf16.gmra.mxu0 %v1330
  %v1370 = vpop.f32.mrf.mxu0
  %v1371 = vadd.f32 %v139, %v1370
  %v1372 = vpop.f32.mrf.mxu0
  %v1373 = vadd.f32 %v139, %v1372
  %1374 = vmatmul.bf16.gmra.mxu0 %v1333
  %v1375 = vpop.f32.mrf.mxu0
  %v1376 = vadd.f32 %v139, %v1375
  %v1377 = vpop.f32.mrf.mxu0
  %v1378 = vadd.f32 %v139, %v1377
  %1379 = vmatmul.bf16.gmra.mxu0 %v1336
  %v1380 = vpop.f32.mrf.mxu0
  %v1381 = vadd.f32 %v139, %v1380
  %v1382 = vpop.f32.mrf.mxu0
  %v1383 = vadd.f32 %v139, %v1382
  %1384 = vmatmul.bf16.gmra.mxu0 %v1339
  %v1385 = vpop.f32.mrf.mxu0
  %v1386 = vadd.f32 %v139, %v1385
  %v1387 = vpop.f32.mrf.mxu0
  %v1388 = vadd.f32 %v139, %v1387
  %1389 = vmatmul.bf16.gmra.mxu0 %v1342
  %v1390 = vpop.f32.mrf.mxu0
  %v1391 = vadd.f32 %v139, %v1390
  %v1392 = vpop.f32.mrf.mxu0
  %v1393 = vadd.f32 %v139, %v1392
  %1394 = vmatmul.bf16.gmra.mxu0 %v1345
  %v1395 = vpop.f32.mrf.mxu0
  %v1396 = vadd.f32 %v139, %v1395
  %v1397 = vpop.f32.mrf.mxu0
  %v1398 = vadd.f32 %v139, %v1397
  %1399 = vmatmul.bf16.gmra.mxu0 %v1348
  %v1400 = vpop.f32.mrf.mxu0
  %v1401 = vadd.f32 %v139, %v1400
  %v1402 = vpop.f32.mrf.mxu0
  %v1403 = vadd.f32 %v139, %v1402
  %1404 = vmatmul.bf16.gmra.mxu0 %v1351
  %v1405 = vpop.f32.mrf.mxu0
  %v1406 = vadd.f32 %v139, %v1405
  %v1407 = vpop.f32.mrf.mxu0
  %v1408 = vadd.f32 %v139, %v1407
  %1409 = vmatmul.bf16.gmra.mxu0 %v1354
  %v1410 = vpop.f32.mrf.mxu0
  %v1411 = vadd.f32 %v139, %v1410
  %v1412 = vpop.f32.mrf.mxu0
  %1413 = vdwg.mxu0
  %1414 = vmatpush.bf16.msra.mxu0 0
  %1415 = vmatpush.bf16.msra.mxu0 0
  %1416 = vmatpush.bf16.msra.mxu0 0
  %1417 = vmatpush.bf16.msra.mxu0 0
  %1418 = vmatpush.bf16.msra.mxu0 %v174
  %1419 = vmatpush.bf16.msra.mxu0 %v172
  %1420 = vmatpush.bf16.msra.mxu0 %v170
  %1421 = vmatpush.bf16.msra.mxu0 %v168
  %1422 = vmatmul.bf16.gmra.mxu0 %v1327
  %v1423 = vpop.f32.mrf.mxu0
  %v1424 = vadd.f32 %v140, %v1423
  %v1425 = vpop.f32.mrf.mxu0
  %v1426 = vadd.f32 %v140, %v1425
  %1427 = vmatmul.bf16.gmra.mxu0 %v1330
  %v1428 = vpop.f32.mrf.mxu0
  %v1429 = vadd.f32 %v140, %v1428
  %v1430 = vpop.f32.mrf.mxu0
  %v1431 = vadd.f32 %v140, %v1430
  %1432 = vmatmul.bf16.gmra.mxu0 %v1333
  %v1433 = vpop.f32.mrf.mxu0
  %v1434 = vadd.f32 %v140, %v1433
  %v1435 = vpop.f32.mrf.mxu0
  %v1436 = vadd.f32 %v140, %v1435
  %1437 = vmatmul.bf16.gmra.mxu0 %v1336
  %v1438 = vpop.f32.mrf.mxu0
  %v1439 = vadd.f32 %v140, %v1438
  %v1440 = vpop.f32.mrf.mxu0
  %v1441 = vadd.f32 %v140, %v1440
  %1442 = vmatmul.bf16.gmra.mxu0 %v1339
  %v1443 = vpop.f32.mrf.mxu0
  %v1444 = vadd.f32 %v140, %v1443
  %v1445 = vpop.f32.mrf.mxu0
  %v1446 = vadd.f32 %v140, %v1445
  %1447 = vmatmul.bf16.gmra.mxu0 %v1342
  %v1448 = vpop.f32.mrf.mxu0
  %v1449 = vadd.f32 %v140, %v1448
  %v1450 = vpop.f32.mrf.mxu0
  %v1451 = vadd.f32 %v140, %v1450
  %1452 = vmatmul.bf16.gmra.mxu0 %v1345
  %v1453 = vpop.f32.mrf.mxu0
  %v1454 = vadd.f32 %v140, %v1453
  %v1455 = vpop.f32.mrf.mxu0
  %v1456 = vadd.f32 %v140, %v1455
  %1457 = vmatmul.bf16.gmra.mxu0 %v1348
  %v1458 = vpop.f32.mrf.mxu0
  %v1459 = vadd.f32 %v140, %v1458
  %v1460 = vpop.f32.mrf.mxu0
  %v1461 = vadd.f32 %v140, %v1460
  %1462 = vmatmul.bf16.gmra.mxu0 %v1351
  %v1463 = vpop.f32.mrf.mxu0
  %v1464 = vadd.f32 %v140, %v1463
  %v1465 = vpop.f32.mrf.mxu0
  %v1466 = vadd.f32 %v140, %v1465
  %1467 = vmatmul.bf16.gmra.mxu0 %v1354
  %v1468 = vpop.f32.mrf.mxu0
  %v1469 = vadd.f32 %v140, %v1468
  %v1470 = vpop.f32.mrf.mxu0
  %1471 = vdwg.mxu0
  %vm1472 = vcmp.gt.f32.partialorder %v1366, 0.0
  %vm1473 = vcmp.gt.f32.partialorder %v1424, 0.0
  %vm1474 = vcmp.gt.f32.partialorder %v1368, 0.0
  %vm1475 = vcmp.gt.f32.partialorder %v1426, 0.0
  %vm1476 = vcmp.gt.f32.partialorder %v1371, 0.0
  %vm1477 = vcmp.gt.f32.partialorder %v1429, 0.0
  %vm1478 = vcmp.gt.f32.partialorder %v1373, 0.0
  %vm1479 = vcmp.gt.f32.partialorder %v1431, 0.0
  %vm1480 = vcmp.gt.f32.partialorder %v1376, 0.0
  %vm1481 = vcmp.gt.f32.partialorder %v1434, 0.0
  %vm1482 = vcmp.gt.f32.partialorder %v1378, 0.0
  %vm1483 = vcmp.gt.f32.partialorder %v1436, 0.0
  %vm1484 = vcmp.gt.f32.partialorder %v1381, 0.0
  %vm1485 = vcmp.gt.f32.partialorder %v1439, 0.0
  %vm1486 = vcmp.gt.f32.partialorder %v1383, 0.0
  %vm1487 = vcmp.gt.f32.partialorder %v1441, 0.0
  %vm1488 = vcmp.gt.f32.partialorder %v1386, 0.0
  %vm1489 = vcmp.gt.f32.partialorder %v1444, 0.0
  %vm1490 = vcmp.gt.f32.partialorder %v1388, 0.0
  %vm1491 = vcmp.gt.f32.partialorder %v1446, 0.0
  %vm1492 = vcmp.gt.f32.partialorder %v1391, 0.0
  %vm1493 = vcmp.gt.f32.partialorder %v1449, 0.0
  %vm1494 = vcmp.gt.f32.partialorder %v1393, 0.0
  %vm1495 = vcmp.gt.f32.partialorder %v1451, 0.0
  %vm1496 = vcmp.gt.f32.partialorder %v1396, 0.0
  %vm1497 = vcmp.gt.f32.partialorder %v1454, 0.0
  %vm1498 = vcmp.gt.f32.partialorder %v1398, 0.0
  %vm1499 = vcmp.gt.f32.partialorder %v1456, 0.0
  %vm1500 = vcmp.gt.f32.partialorder %v1401, 0.0
  %vm1501 = vcmp.gt.f32.partialorder %v1459, 0.0
  %vm1502 = vcmp.gt.f32.partialorder %v1403, 0.0
  %vm1503 = vcmp.gt.f32.partialorder %v1461, 0.0
  %vm1504 = vcmp.gt.f32.partialorder %v1406, 0.0
  %vm1505 = vcmp.gt.f32.partialorder %v1464, 0.0
  %vm1506 = vcmp.gt.f32.partialorder %v1408, 0.0
  %vm1507 = vcmp.gt.f32.partialorder %v1466, 0.0
  %vm1508 = vcmp.gt.f32.partialorder %v1411, 0.0
  %vm1509 = vcmp.gt.f32.partialorder %v1469, 0.0
  %v1510 = vmul.f32 %v1366, 0.01
  %v1511 = vmul.f32 %v1424, 0.01
  %v1512 = vmul.f32 %v1368, 0.01
  %v1513 = vmul.f32 %v1426, 0.01
  %v1514 = vmul.f32 %v1371, 0.01
  %v1515 = vmul.f32 %v1429, 0.01
  %v1516 = vmul.f32 %v1373, 0.01
  %v1517 = vmul.f32 %v1431, 0.01
  %v1518 = vmul.f32 %v1376, 0.01
  %v1519 = vmul.f32 %v1434, 0.01
  %v1520 = vmul.f32 %v1378, 0.01
  %v1521 = vmul.f32 %v1436, 0.01
  %v1522 = vmul.f32 %v1381, 0.01
  %v1523 = vmul.f32 %v1439, 0.01
  %v1524 = vmul.f32 %v1383, 0.01
  %v1525 = vmul.f32 %v1441, 0.01
  %v1526 = vmul.f32 %v1386, 0.01
  %v1527 = vmul.f32 %v1444, 0.01
  %v1528 = vmul.f32 %v1388, 0.01
  %v1529 = vmul.f32 %v1446, 0.01
  %v1530 = vmul.f32 %v1391, 0.01
  %v1531 = vmul.f32 %v1449, 0.01
  %v1532 = vmul.f32 %v1393, 0.01
  %v1533 = vmul.f32 %v1451, 0.01
  %v1534 = vmul.f32 %v1396, 0.01
  %v1535 = vmul.f32 %v1454, 0.01
  %v1536 = vmul.f32 %v1398, 0.01
  %v1537 = vmul.f32 %v1456, 0.01
  %v1538 = vmul.f32 %v1401, 0.01
  %v1539 = vmul.f32 %v1459, 0.01
  %v1540 = vmul.f32 %v1403, 0.01
  %v1541 = vmul.f32 %v1461, 0.01
  %v1542 = vmul.f32 %v1406, 0.01
  %v1543 = vmul.f32 %v1464, 0.01
  %v1544 = vmul.f32 %v1408, 0.01
  %v1545 = vmul.f32 %v1466, 0.01
  %v1546 = vmul.f32 %v1411, 0.01
  %v1547 = vmul.f32 %v1469, 0.01
  %v1548 = vsel %vm1472, %v1366, %v1510
  %v1549 = vsel %vm1473, %v1424, %v1511
  %v1550 = vsel %vm1474, %v1368, %v1512
  %v1551 = vsel %vm1475, %v1426, %v1513
  %v1552 = vsel %vm1476, %v1371, %v1514
  %v1553 = vsel %vm1477, %v1429, %v1515
  %v1554 = vsel %vm1478, %v1373, %v1516
  %v1555 = vsel %vm1479, %v1431, %v1517
  %v1556 = vsel %vm1480, %v1376, %v1518
  %v1557 = vsel %vm1481, %v1434, %v1519
  %v1558 = vsel %vm1482, %v1378, %v1520
  %v1559 = vsel %vm1483, %v1436, %v1521
  %v1560 = vsel %vm1484, %v1381, %v1522
  %v1561 = vsel %vm1485, %v1439, %v1523
  %v1562 = vsel %vm1486, %v1383, %v1524
  %v1563 = vsel %vm1487, %v1441, %v1525
  %v1564 = vsel %vm1488, %v1386, %v1526
  %v1565 = vsel %vm1489, %v1444, %v1527
  %v1566 = vsel %vm1490, %v1388, %v1528
  %v1567 = vsel %vm1491, %v1446, %v1529
  %v1568 = vsel %vm1492, %v1391, %v1530
  %v1569 = vsel %vm1493, %v1449, %v1531
  %v1570 = vsel %vm1494, %v1393, %v1532
  %v1571 = vsel %vm1495, %v1451, %v1533
  %v1572 = vsel %vm1496, %v1396, %v1534
  %v1573 = vsel %vm1497, %v1454, %v1535
  %v1574 = vsel %vm1498, %v1398, %v1536
  %v1575 = vsel %vm1499, %v1456, %v1537
  %v1576 = vsel %vm1500, %v1401, %v1538
  %v1577 = vsel %vm1501, %v1459, %v1539
  %v1578 = vsel %vm1502, %v1403, %v1540
  %v1579 = vsel %vm1503, %v1461, %v1541
  %v1580 = vsel %vm1504, %v1406, %v1542
  %v1581 = vsel %vm1505, %v1464, %v1543
  %v1582 = vsel %vm1506, %v1408, %v1544
  %v1583 = vsel %vm1507, %v1466, %v1545
  %v1584 = vsel %vm1508, %v1411, %v1546
  %v1585 = vsel %vm1509, %v1469, %v1547
  %v1586 = vpack.c.bf16 %v1550, %v1548
  %v1587 = vpack.c.bf16 %v1551, %v1549
  %v1588 = vpack.c.bf16 %v1554, %v1552
  %v1589 = vpack.c.bf16 %v1555, %v1553
  %v1590 = vpack.c.bf16 %v1558, %v1556
  %v1591 = vpack.c.bf16 %v1559, %v1557
  %v1592 = vpack.c.bf16 %v1562, %v1560
  %v1593 = vpack.c.bf16 %v1563, %v1561
  %v1594 = vpack.c.bf16 %v1566, %v1564
  %v1595 = vpack.c.bf16 %v1567, %v1565
  %v1596 = vpack.c.bf16 %v1570, %v1568
  %v1597 = vpack.c.bf16 %v1571, %v1569
  %v1598 = vpack.c.bf16 %v1574, %v1572
  %v1599 = vpack.c.bf16 %v1575, %v1573
  %v1600 = vpack.c.bf16 %v1578, %v1576
  %v1601 = vpack.c.bf16 %v1579, %v1577
  %v1602 = vpack.c.bf16 %v1582, %v1580
  %v1603 = vpack.c.bf16 %v1583, %v1581
  %v1604 = vpack.c.bf16 %v1584, %v1584
  %v1605 = vpack.c.bf16 %v1585, %v1585
  %1606 = vmatpush.bf16.msra.mxu0 %v538
  %1607 = vmatpush.bf16.msra.mxu0 %v537
  %1608 = vmatpush.bf16.msra.mxu0 %v536
  %1609 = vmatpush.bf16.msra.mxu0 %v535
  %1610 = vmatpush.bf16.msra.mxu0 %v534
  %1611 = vmatpush.bf16.msra.mxu0 %v533
  %1612 = vmatpush.bf16.msra.mxu0 %v532
  %1613 = vmatpush.bf16.msra.mxu0 %v531
  %1614 = vmatmul.bf16.gmra.mxu0 %v1586
  %v1615 = vpop.f32.mrf.mxu0
  %v1616 = vadd.f32 %v465, %v1615
  %v1617 = vpop.f32.mrf.mxu0
  %v1618 = vadd.f32 %v465, %v1617
  %1619 = vmatmul.bf16.gmra.mxu0 %v1588
  %v1620 = vpop.f32.mrf.mxu0
  %v1621 = vadd.f32 %v465, %v1620
  %v1622 = vpop.f32.mrf.mxu0
  %v1623 = vadd.f32 %v465, %v1622
  %1624 = vmatmul.bf16.gmra.mxu0 %v1590
  %v1625 = vpop.f32.mrf.mxu0
  %v1626 = vadd.f32 %v465, %v1625
  %v1627 = vpop.f32.mrf.mxu0
  %v1628 = vadd.f32 %v465, %v1627
  %1629 = vmatmul.bf16.gmra.mxu0 %v1592
  %v1630 = vpop.f32.mrf.mxu0
  %v1631 = vadd.f32 %v465, %v1630
  %v1632 = vpop.f32.mrf.mxu0
  %v1633 = vadd.f32 %v465, %v1632
  %1634 = vmatmul.bf16.gmra.mxu0 %v1594
  %v1635 = vpop.f32.mrf.mxu0
  %v1636 = vadd.f32 %v465, %v1635
  %v1637 = vpop.f32.mrf.mxu0
  %v1638 = vadd.f32 %v465, %v1637
  %1639 = vmatmul.bf16.gmra.mxu0 %v1596
  %v1640 = vpop.f32.mrf.mxu0
  %v1641 = vadd.f32 %v465, %v1640
  %v1642 = vpop.f32.mrf.mxu0
  %v1643 = vadd.f32 %v465, %v1642
  %1644 = vmatmul.bf16.gmra.mxu0 %v1598
  %v1645 = vpop.f32.mrf.mxu0
  %v1646 = vadd.f32 %v465, %v1645
  %v1647 = vpop.f32.mrf.mxu0
  %v1648 = vadd.f32 %v465, %v1647
  %1649 = vmatmul.bf16.gmra.mxu0 %v1600
  %v1650 = vpop.f32.mrf.mxu0
  %v1651 = vadd.f32 %v465, %v1650
  %v1652 = vpop.f32.mrf.mxu0
  %v1653 = vadd.f32 %v465, %v1652
  %1654 = vmatmul.bf16.gmra.mxu0 %v1602
  %v1655 = vpop.f32.mrf.mxu0
  %v1656 = vadd.f32 %v465, %v1655
  %v1657 = vpop.f32.mrf.mxu0
  %v1658 = vadd.f32 %v465, %v1657
  %1659 = vmatmul.bf16.gmra.mxu0 %v1604
  %v1660 = vpop.f32.mrf.mxu0
  %v1661 = vadd.f32 %v465, %v1660
  %v1662 = vpop.f32.mrf.mxu0
  %1663 = vdwg.mxu0
  %1664 = vmatpush.bf16.msra.mxu0 %v546
  %1665 = vmatpush.bf16.msra.mxu0 %v545
  %1666 = vmatpush.bf16.msra.mxu0 %v544
  %1667 = vmatpush.bf16.msra.mxu0 %v543
  %1668 = vmatpush.bf16.msra.mxu0 %v542
  %1669 = vmatpush.bf16.msra.mxu0 %v541
  %1670 = vmatpush.bf16.msra.mxu0 %v540
  %1671 = vmatpush.bf16.msra.mxu0 %v539
  %1672 = vmatmul.bf16.gmra.mxu0 %v1587
  %v1673 = vpop.f32.mrf.mxu0
  %v1674 = vadd.f32 %v1616, %v1673
  %v1675 = vpop.f32.mrf.mxu0
  %v1676 = vadd.f32 %v1618, %v1675
  %1677 = vmatmul.bf16.gmra.mxu0 %v1589
  %v1678 = vpop.f32.mrf.mxu0
  %v1679 = vadd.f32 %v1621, %v1678
  %v1680 = vpop.f32.mrf.mxu0
  %v1681 = vadd.f32 %v1623, %v1680
  %1682 = vmatmul.bf16.gmra.mxu0 %v1591
  %v1683 = vpop.f32.mrf.mxu0
  %v1684 = vadd.f32 %v1626, %v1683
  %v1685 = vpop.f32.mrf.mxu0
  %v1686 = vadd.f32 %v1628, %v1685
  %1687 = vmatmul.bf16.gmra.mxu0 %v1593
  %v1688 = vpop.f32.mrf.mxu0
  %v1689 = vadd.f32 %v1631, %v1688
  %v1690 = vpop.f32.mrf.mxu0
  %v1691 = vadd.f32 %v1633, %v1690
  %1692 = vmatmul.bf16.gmra.mxu0 %v1595
  %v1693 = vpop.f32.mrf.mxu0
  %v1694 = vadd.f32 %v1636, %v1693
  %v1695 = vpop.f32.mrf.mxu0
  %v1696 = vadd.f32 %v1638, %v1695
  %1697 = vmatmul.bf16.gmra.mxu0 %v1597
  %v1698 = vpop.f32.mrf.mxu0
  %v1699 = vadd.f32 %v1641, %v1698
  %v1700 = vpop.f32.mrf.mxu0
  %v1701 = vadd.f32 %v1643, %v1700
  %1702 = vmatmul.bf16.gmra.mxu0 %v1599
  %v1703 = vpop.f32.mrf.mxu0
  %v1704 = vadd.f32 %v1646, %v1703
  %v1705 = vpop.f32.mrf.mxu0
  %v1706 = vadd.f32 %v1648, %v1705
  %1707 = vmatmul.bf16.gmra.mxu0 %v1601
  %v1708 = vpop.f32.mrf.mxu0
  %v1709 = vadd.f32 %v1651, %v1708
  %v1710 = vpop.f32.mrf.mxu0
  %v1711 = vadd.f32 %v1653, %v1710
  %1712 = vmatmul.bf16.gmra.mxu0 %v1603
  %v1713 = vpop.f32.mrf.mxu0
  %v1714 = vadd.f32 %v1656, %v1713
  %v1715 = vpop.f32.mrf.mxu0
  %v1716 = vadd.f32 %v1658, %v1715
  %1717 = vmatmul.bf16.gmra.mxu0 %v1605
  %v1718 = vpop.f32.mrf.mxu0
  %v1719 = vadd.f32 %v1661, %v1718
  %v1720 = vpop.f32.mrf.mxu0
  %1721 = vdwg.mxu0
  %vm1722 = vcmp.gt.f32.partialorder %v1674, 0.0
  %vm1723 = vcmp.gt.f32.partialorder %v1676, 0.0
  %vm1724 = vcmp.gt.f32.partialorder %v1679, 0.0
  %vm1725 = vcmp.gt.f32.partialorder %v1681, 0.0
  %vm1726 = vcmp.gt.f32.partialorder %v1684, 0.0
  %vm1727 = vcmp.gt.f32.partialorder %v1686, 0.0
  %vm1728 = vcmp.gt.f32.partialorder %v1689, 0.0
  %vm1729 = vcmp.gt.f32.partialorder %v1691, 0.0
  %vm1730 = vcmp.gt.f32.partialorder %v1694, 0.0
  %vm1731 = vcmp.gt.f32.partialorder %v1696, 0.0
  %vm1732 = vcmp.gt.f32.partialorder %v1699, 0.0
  %vm1733 = vcmp.gt.f32.partialorder %v1701, 0.0
  %vm1734 = vcmp.gt.f32.partialorder %v1704, 0.0
  %vm1735 = vcmp.gt.f32.partialorder %v1706, 0.0
  %vm1736 = vcmp.gt.f32.partialorder %v1709, 0.0
  %vm1737 = vcmp.gt.f32.partialorder %v1711, 0.0
  %vm1738 = vcmp.gt.f32.partialorder %v1714, 0.0
  %vm1739 = vcmp.gt.f32.partialorder %v1716, 0.0
  %vm1740 = vcmp.gt.f32.partialorder %v1719, 0.0
  %v1741 = vmul.f32 %v1674, 0.01
  %v1742 = vmul.f32 %v1676, 0.01
  %v1743 = vmul.f32 %v1679, 0.01
  %v1744 = vmul.f32 %v1681, 0.01
  %v1745 = vmul.f32 %v1684, 0.01
  %v1746 = vmul.f32 %v1686, 0.01
  %v1747 = vmul.f32 %v1689, 0.01
  %v1748 = vmul.f32 %v1691, 0.01
  %v1749 = vmul.f32 %v1694, 0.01
  %v1750 = vmul.f32 %v1696, 0.01
  %v1751 = vmul.f32 %v1699, 0.01
  %v1752 = vmul.f32 %v1701, 0.01
  %v1753 = vmul.f32 %v1704, 0.01
  %v1754 = vmul.f32 %v1706, 0.01
  %v1755 = vmul.f32 %v1709, 0.01
  %v1756 = vmul.f32 %v1711, 0.01
  %v1757 = vmul.f32 %v1714, 0.01
  %v1758 = vmul.f32 %v1716, 0.01
  %v1759 = vmul.f32 %v1719, 0.01
  %v1760 = vsel %vm1722, %v1674, %v1741
  %v1761 = vsel %vm1723, %v1676, %v1742
  %v1762 = vsel %vm1724, %v1679, %v1743
  %v1763 = vsel %vm1725, %v1681, %v1744
  %v1764 = vsel %vm1726, %v1684, %v1745
  %v1765 = vsel %vm1727, %v1686, %v1746
  %v1766 = vsel %vm1728, %v1689, %v1747
  %v1767 = vsel %vm1729, %v1691, %v1748
  %v1768 = vsel %vm1730, %v1694, %v1749
  %v1769 = vsel %vm1731, %v1696, %v1750
  %v1770 = vsel %vm1732, %v1699, %v1751
  %v1771 = vsel %vm1733, %v1701, %v1752
  %v1772 = vsel %vm1734, %v1704, %v1753
  %v1773 = vsel %vm1735, %v1706, %v1754
  %v1774 = vsel %vm1736, %v1709, %v1755
  %v1775 = vsel %vm1737, %v1711, %v1756
  %v1776 = vsel %vm1738, %v1714, %v1757
  %v1777 = vsel %vm1739, %v1716, %v1758
  %v1778 = vsel %vm1740, %v1719, %v1759
  %v1779 = vpack.c.bf16 %v1761, %v1760
  %v1780 = vpack.c.bf16 %v1763, %v1762
  %v1781 = vpack.c.bf16 %v1765, %v1764
  %v1782 = vpack.c.bf16 %v1767, %v1766
  %v1783 = vpack.c.bf16 %v1769, %v1768
  %v1784 = vpack.c.bf16 %v1771, %v1770
  %v1785 = vpack.c.bf16 %v1773, %v1772
  %v1786 = vpack.c.bf16 %v1775, %v1774
  %v1787 = vpack.c.bf16 %v1777, %v1776
  %v1788 = vpack.c.bf16 %v1778, %v1778
  %1789 = vmatpush.bf16.msra.mxu0 %v788
  %1790 = vmatpush.bf16.msra.mxu0 %v787
  %1791 = vmatpush.bf16.msra.mxu0 %v786
  %1792 = vmatpush.bf16.msra.mxu0 %v785
  %1793 = vmatpush.bf16.msra.mxu0 %v784
  %1794 = vmatpush.bf16.msra.mxu0 %v783
  %1795 = vmatpush.bf16.msra.mxu0 %v782
  %1796 = vmatpush.bf16.msra.mxu0 %v781
  %1797 = vmatmul.bf16.gmra.mxu0 %v1779
  %v1798 = vpop.f32.mrf.mxu0
  %v1799 = vadd.f32 %v747, %v1798
  %v1800 = vpop.f32.mrf.mxu0
  %v1801 = vadd.f32 %v747, %v1800
  %1802 = vmatmul.bf16.gmra.mxu0 %v1780
  %v1803 = vpop.f32.mrf.mxu0
  %v1804 = vadd.f32 %v747, %v1803
  %v1805 = vpop.f32.mrf.mxu0
  %v1806 = vadd.f32 %v747, %v1805
  %1807 = vmatmul.bf16.gmra.mxu0 %v1781
  %v1808 = vpop.f32.mrf.mxu0
  %v1809 = vadd.f32 %v747, %v1808
  %v1810 = vpop.f32.mrf.mxu0
  %v1811 = vadd.f32 %v747, %v1810
  %1812 = vmatmul.bf16.gmra.mxu0 %v1782
  %v1813 = vpop.f32.mrf.mxu0
  %v1814 = vadd.f32 %v747, %v1813
  %v1815 = vpop.f32.mrf.mxu0
  %v1816 = vadd.f32 %v747, %v1815
  %1817 = vmatmul.bf16.gmra.mxu0 %v1783
  %v1818 = vpop.f32.mrf.mxu0
  %v1819 = vadd.f32 %v747, %v1818
  %v1820 = vpop.f32.mrf.mxu0
  %v1821 = vadd.f32 %v747, %v1820
  %1822 = vmatmul.bf16.gmra.mxu0 %v1784
  %v1823 = vpop.f32.mrf.mxu0
  %v1824 = vadd.f32 %v747, %v1823
  %v1825 = vpop.f32.mrf.mxu0
  %v1826 = vadd.f32 %v747, %v1825
  %1827 = vmatmul.bf16.gmra.mxu0 %v1785
  %v1828 = vpop.f32.mrf.mxu0
  %v1829 = vadd.f32 %v747, %v1828
  %v1830 = vpop.f32.mrf.mxu0
  %v1831 = vadd.f32 %v747, %v1830
  %1832 = vmatmul.bf16.gmra.mxu0 %v1786
  %v1833 = vpop.f32.mrf.mxu0
  %v1834 = vadd.f32 %v747, %v1833
  %v1835 = vpop.f32.mrf.mxu0
  %v1836 = vadd.f32 %v747, %v1835
  %1837 = vmatmul.bf16.gmra.mxu0 %v1787
  %v1838 = vpop.f32.mrf.mxu0
  %v1839 = vadd.f32 %v747, %v1838
  %v1840 = vpop.f32.mrf.mxu0
  %v1841 = vadd.f32 %v747, %v1840
  %1842 = vmatmul.bf16.gmra.mxu0 %v1788
  %v1843 = vpop.f32.mrf.mxu0
  %v1844 = vadd.f32 %v747, %v1843
  %v1845 = vpop.f32.mrf.mxu0
  %1846 = vdwg.mxu0
  %vm1847 = vcmp.gt.f32.partialorder %v1799, 0.0
  %vm1848 = vcmp.gt.f32.partialorder %v1801, 0.0
  %vm1849 = vcmp.gt.f32.partialorder %v1804, 0.0
  %vm1850 = vcmp.gt.f32.partialorder %v1806, 0.0
  %vm1851 = vcmp.gt.f32.partialorder %v1809, 0.0
  %vm1852 = vcmp.gt.f32.partialorder %v1811, 0.0
  %vm1853 = vcmp.gt.f32.partialorder %v1814, 0.0
  %vm1854 = vcmp.gt.f32.partialorder %v1816, 0.0
  %vm1855 = vcmp.gt.f32.partialorder %v1819, 0.0
  %vm1856 = vcmp.gt.f32.partialorder %v1821, 0.0
  %vm1857 = vcmp.gt.f32.partialorder %v1824, 0.0
  %vm1858 = vcmp.gt.f32.partialorder %v1826, 0.0
  %vm1859 = vcmp.gt.f32.partialorder %v1829, 0.0
  %vm1860 = vcmp.gt.f32.partialorder %v1831, 0.0
  %vm1861 = vcmp.gt.f32.partialorder %v1834, 0.0
  %vm1862 = vcmp.gt.f32.partialorder %v1836, 0.0
  %vm1863 = vcmp.gt.f32.partialorder %v1839, 0.0
  %vm1864 = vcmp.gt.f32.partialorder %v1841, 0.0
  %vm1865 = vcmp.gt.f32.partialorder %v1844, 0.0
  %v1866 = vmul.f32 %v1799, 0.01
  %v1867 = vmul.f32 %v1801, 0.01
  %v1868 = vmul.f32 %v1804, 0.01
  %v1869 = vmul.f32 %v1806, 0.01
  %v1870 = vmul.f32 %v1809, 0.01
  %v1871 = vmul.f32 %v1811, 0.01
  %v1872 = vmul.f32 %v1814, 0.01
  %v1873 = vmul.f32 %v1816, 0.01
  %v1874 = vmul.f32 %v1819, 0.01
  %v1875 = vmul.f32 %v1821, 0.01
  %v1876 = vmul.f32 %v1824, 0.01
  %v1877 = vmul.f32 %v1826, 0.01
  %v1878 = vmul.f32 %v1829, 0.01
  %v1879 = vmul.f32 %v1831, 0.01
  %v1880 = vmul.f32 %v1834, 0.01
  %v1881 = vmul.f32 %v1836, 0.01
  %v1882 = vmul.f32 %v1839, 0.01
  %v1883 = vmul.f32 %v1841, 0.01
  %v1884 = vmul.f32 %v1844, 0.01
  %v1885 = vsel %vm1847, %v1799, %v1866
  %v1886 = vsel %vm1848, %v1801, %v1867
  %v1887 = vsel %vm1849, %v1804, %v1868
  %v1888 = vsel %vm1850, %v1806, %v1869
  %v1889 = vsel %vm1851, %v1809, %v1870
  %v1890 = vsel %vm1852, %v1811, %v1871
  %v1891 = vsel %vm1853, %v1814, %v1872
  %v1892 = vsel %vm1854, %v1816, %v1873
  %v1893 = vsel %vm1855, %v1819, %v1874
  %v1894 = vsel %vm1856, %v1821, %v1875
  %v1895 = vsel %vm1857, %v1824, %v1876
  %v1896 = vsel %vm1858, %v1826, %v1877
  %v1897 = vsel %vm1859, %v1829, %v1878
  %v1898 = vsel %vm1860, %v1831, %v1879
  %v1899 = vsel %vm1861, %v1834, %v1880
  %v1900 = vsel %vm1862, %v1836, %v1881
  %v1901 = vsel %vm1863, %v1839, %v1882
  %v1902 = vsel %vm1864, %v1841, %v1883
  %v1903 = vsel %vm1865, %v1844, %v1884
  %v1904 = vpack.c.bf16 %v1886, %v1885
  %v1905 = vpack.c.bf16 %v1888, %v1887
  %v1906 = vpack.c.bf16 %v1890, %v1889
  %v1907 = vpack.c.bf16 %v1892, %v1891
  %v1908 = vpack.c.bf16 %v1894, %v1893
  %v1909 = vpack.c.bf16 %v1896, %v1895
  %v1910 = vpack.c.bf16 %v1898, %v1897
  %v1911 = vpack.c.bf16 %v1900, %v1899
  %v1912 = vpack.c.bf16 %v1902, %v1901
  %v1913 = vpack.c.bf16 %v1903, %v1903
  %1914 = vmatpush.bf16.msra.mxu0 %v964
  %1915 = vmatpush.bf16.msra.mxu0 %v963
  %1916 = vmatpush.bf16.msra.mxu0 %v962
  %1917 = vmatpush.bf16.msra.mxu0 %v961
  %1918 = vmatpush.bf16.msra.mxu0 %v960
  %1919 = vmatpush.bf16.msra.mxu0 %v959
  %1920 = vmatpush.bf16.msra.mxu0 %v958
  %1921 = vmatpush.bf16.msra.mxu0 %v957
  %1922 = vmatmul.bf16.gmra.mxu0 %v1904
  %v1923 = vpop.f32.mrf.mxu0
  %v1924 = vadd.f32 %v923, %v1923
  %v1925 = vpop.f32.mrf.mxu0
  %v1926 = vadd.f32 %v923, %v1925
  %1927 = vmatmul.bf16.gmra.mxu0 %v1905
  %v1928 = vpop.f32.mrf.mxu0
  %v1929 = vadd.f32 %v923, %v1928
  %v1930 = vpop.f32.mrf.mxu0
  %v1931 = vadd.f32 %v923, %v1930
  %1932 = vmatmul.bf16.gmra.mxu0 %v1906
  %v1933 = vpop.f32.mrf.mxu0
  %v1934 = vadd.f32 %v923, %v1933
  %v1935 = vpop.f32.mrf.mxu0
  %v1936 = vadd.f32 %v923, %v1935
  %1937 = vmatmul.bf16.gmra.mxu0 %v1907
  %v1938 = vpop.f32.mrf.mxu0
  %v1939 = vadd.f32 %v923, %v1938
  %v1940 = vpop.f32.mrf.mxu0
  %v1941 = vadd.f32 %v923, %v1940
  %1942 = vmatmul.bf16.gmra.mxu0 %v1908
  %v1943 = vpop.f32.mrf.mxu0
  %v1944 = vadd.f32 %v923, %v1943
  %v1945 = vpop.f32.mrf.mxu0
  %v1946 = vadd.f32 %v923, %v1945
  %1947 = vmatmul.bf16.gmra.mxu0 %v1909
  %v1948 = vpop.f32.mrf.mxu0
  %v1949 = vadd.f32 %v923, %v1948
  %v1950 = vpop.f32.mrf.mxu0
  %v1951 = vadd.f32 %v923, %v1950
  %1952 = vmatmul.bf16.gmra.mxu0 %v1910
  %v1953 = vpop.f32.mrf.mxu0
  %v1954 = vadd.f32 %v923, %v1953
  %v1955 = vpop.f32.mrf.mxu0
  %v1956 = vadd.f32 %v923, %v1955
  %1957 = vmatmul.bf16.gmra.mxu0 %v1911
  %v1958 = vpop.f32.mrf.mxu0
  %v1959 = vadd.f32 %v923, %v1958
  %v1960 = vpop.f32.mrf.mxu0
  %v1961 = vadd.f32 %v923, %v1960
  %1962 = vmatmul.bf16.gmra.mxu0 %v1912
  %v1963 = vpop.f32.mrf.mxu0
  %v1964 = vadd.f32 %v923, %v1963
  %v1965 = vpop.f32.mrf.mxu0
  %v1966 = vadd.f32 %v923, %v1965
  %1967 = vmatmul.bf16.gmra.mxu0 %v1913
  %v1968 = vpop.f32.mrf.mxu0
  %v1969 = vadd.f32 %v923, %v1968
  %v1970 = vpop.f32.mrf.mxu0
  %1971 = vdwg.mxu0
  %vm1972 = vcmp.gt.f32.partialorder %v1924, 0.0
  %vm1973 = vcmp.gt.f32.partialorder %v1926, 0.0
  %vm1974 = vcmp.gt.f32.partialorder %v1929, 0.0
  %vm1975 = vcmp.gt.f32.partialorder %v1931, 0.0
  %vm1976 = vcmp.gt.f32.partialorder %v1934, 0.0
  %vm1977 = vcmp.gt.f32.partialorder %v1936, 0.0
  %vm1978 = vcmp.gt.f32.partialorder %v1939, 0.0
  %vm1979 = vcmp.gt.f32.partialorder %v1941, 0.0
  %vm1980 = vcmp.gt.f32.partialorder %v1944, 0.0
  %vm1981 = vcmp.gt.f32.partialorder %v1946, 0.0
  %vm1982 = vcmp.gt.f32.partialorder %v1949, 0.0
  %vm1983 = vcmp.gt.f32.partialorder %v1951, 0.0
  %vm1984 = vcmp.gt.f32.partialorder %v1954, 0.0
  %vm1985 = vcmp.gt.f32.partialorder %v1956, 0.0
  %vm1986 = vcmp.gt.f32.partialorder %v1959, 0.0
  %vm1987 = vcmp.gt.f32.partialorder %v1961, 0.0
  %vm1988 = vcmp.gt.f32.partialorder %v1964, 0.0
  %vm1989 = vcmp.gt.f32.partialorder %v1966, 0.0
  %vm1990 = vcmp.gt.f32.partialorder %v1969, 0.0
  %v1991 = vmul.f32 %v1924, 0.01
  %v1992 = vmul.f32 %v1926, 0.01
  %v1993 = vmul.f32 %v1929, 0.01
  %v1994 = vmul.f32 %v1931, 0.01
  %v1995 = vmul.f32 %v1934, 0.01
  %v1996 = vmul.f32 %v1936, 0.01
  %v1997 = vmul.f32 %v1939, 0.01
  %v1998 = vmul.f32 %v1941, 0.01
  %v1999 = vmul.f32 %v1944, 0.01
  %v2000 = vmul.f32 %v1946, 0.01
  %v2001 = vmul.f32 %v1949, 0.01
  %v2002 = vmul.f32 %v1951, 0.01
  %v2003 = vmul.f32 %v1954, 0.01
  %v2004 = vmul.f32 %v1956, 0.01
  %v2005 = vmul.f32 %v1959, 0.01
  %v2006 = vmul.f32 %v1961, 0.01
  %v2007 = vmul.f32 %v1964, 0.01
  %v2008 = vmul.f32 %v1966, 0.01
  %v2009 = vmul.f32 %v1969, 0.01
  %v2010 = vsel %vm1972, %v1924, %v1991
  %v2011 = vsel %vm1973, %v1926, %v1992
  %v2012 = vsel %vm1974, %v1929, %v1993
  %v2013 = vsel %vm1975, %v1931, %v1994
  %v2014 = vsel %vm1976, %v1934, %v1995
  %v2015 = vsel %vm1977, %v1936, %v1996
  %v2016 = vsel %vm1978, %v1939, %v1997
  %v2017 = vsel %vm1979, %v1941, %v1998
  %v2018 = vsel %vm1980, %v1944, %v1999
  %v2019 = vsel %vm1981, %v1946, %v2000
  %v2020 = vsel %vm1982, %v1949, %v2001
  %v2021 = vsel %vm1983, %v1951, %v2002
  %v2022 = vsel %vm1984, %v1954, %v2003
  %v2023 = vsel %vm1985, %v1956, %v2004
  %v2024 = vsel %vm1986, %v1959, %v2005
  %v2025 = vsel %vm1987, %v1961, %v2006
  %v2026 = vsel %vm1988, %v1964, %v2007
  %v2027 = vsel %vm1989, %v1966, %v2008
  %v2028 = vsel %vm1990, %v1969, %v2009
  %2029 = vmax.xlane.f32.xlu0 %v2010
  %v2030 = vpop.xlane.xlu0 %2029
  %2031 = vmax.xlane.f32.xlu0 %v2011
  %v2032 = vpop.xlane.xlu0 %2031
  %2033 = vmax.xlane.f32.xlu0 %v2012
  %v2034 = vpop.xlane.xlu0 %2033
  %2035 = vmax.xlane.f32.xlu0 %v2013
  %v2036 = vpop.xlane.xlu0 %2035
  %2037 = vmax.xlane.f32.xlu0 %v2014
  %v2038 = vpop.xlane.xlu0 %2037
  %2039 = vmax.xlane.f32.xlu0 %v2015
  %v2040 = vpop.xlane.xlu0 %2039
  %2041 = vmax.xlane.f32.xlu0 %v2016
  %v2042 = vpop.xlane.xlu0 %2041
  %2043 = vmax.xlane.f32.xlu0 %v2017
  %v2044 = vpop.xlane.xlu0 %2043
  %2045 = vmax.xlane.f32.xlu0 %v2018
  %v2046 = vpop.xlane.xlu0 %2045
  %2047 = vmax.xlane.f32.xlu0 %v2019
  %v2048 = vpop.xlane.xlu0 %2047
  %2049 = vmax.xlane.f32.xlu0 %v2020
  %v2050 = vpop.xlane.xlu0 %2049
  %2051 = vmax.xlane.f32.xlu0 %v2021
  %v2052 = vpop.xlane.xlu0 %2051
  %2053 = vmax.xlane.f32.xlu0 %v2022
  %v2054 = vpop.xlane.xlu0 %2053
  %2055 = vmax.xlane.f32.xlu0 %v2023
  %v2056 = vpop.xlane.xlu0 %2055
  %2057 = vmax.xlane.f32.xlu0 %v2024
  %v2058 = vpop.xlane.xlu0 %2057
  %2059 = vmax.xlane.f32.xlu0 %v2025
  %v2060 = vpop.xlane.xlu0 %2059
  %2061 = vmax.xlane.f32.xlu0 %v2026
  %v2062 = vpop.xlane.xlu0 %2061
  %2063 = vmax.xlane.f32.xlu0 %v2027
  %v2064 = vpop.xlane.xlu0 %2063
  %2065 = vmax.xlane.f32.xlu0 %v2028
  %v2066 = vpop.xlane.xlu0 %2065
  %v2067 = vsub.f32 %v2010, %v2030
  %v2068 = vsub.f32 %v2011, %v2032
  %v2069 = vsub.f32 %v2012, %v2034
  %v2070 = vsub.f32 %v2013, %v2036
  %v2071 = vsub.f32 %v2014, %v2038
  %v2072 = vsub.f32 %v2015, %v2040
  %v2073 = vsub.f32 %v2016, %v2042
  %v2074 = vsub.f32 %v2017, %v2044
  %v2075 = vsub.f32 %v2018, %v2046
  %v2076 = vsub.f32 %v2019, %v2048
  %v2077 = vsub.f32 %v2020, %v2050
  %v2078 = vsub.f32 %v2021, %v2052
  %v2079 = vsub.f32 %v2022, %v2054
  %v2080 = vsub.f32 %v2023, %v2056
  %v2081 = vsub.f32 %v2024, %v2058
  %v2082 = vsub.f32 %v2025, %v2060
  %v2083 = vsub.f32 %v2026, %v2062
  %v2084 = vsub.f32 %v2027, %v2064
  %v2085 = vsub.f32 %v2028, %v2066
  %v2086 = vmul.f32 %v2067, 1.442695
  %v2087 = vpow.pop %v2086
  %v2088 = vmul.f32 %v2068, 1.442695
  %v2089 = vpow.pop %v2088
  %v2090 = vmul.f32 %v2069, 1.442695
  %v2091 = vpow.pop %v2090
  %v2092 = vmul.f32 %v2070, 1.442695
  %v2093 = vpow.pop %v2092
  %v2094 = vmul.f32 %v2071, 1.442695
  %v2095 = vpow.pop %v2094
  %v2096 = vmul.f32 %v2072, 1.442695
  %v2097 = vpow.pop %v2096
  %v2098 = vmul.f32 %v2073, 1.442695
  %v2099 = vpow.pop %v2098
  %v2100 = vmul.f32 %v2074, 1.442695
  %v2101 = vpow.pop %v2100
  %v2102 = vmul.f32 %v2075, 1.442695
  %v2103 = vpow.pop %v2102
  %v2104 = vmul.f32 %v2076, 1.442695
  %v2105 = vpow.pop %v2104
  %v2106 = vmul.f32 %v2077, 1.442695
  %v2107 = vpow.pop %v2106
  %v2108 = vmul.f32 %v2078, 1.442695
  %v2109 = vpow.pop %v2108
  %v2110 = vmul.f32 %v2079, 1.442695
  %v2111 = vpow.pop %v2110
  %v2112 = vmul.f32 %v2080, 1.442695
  %v2113 = vpow.pop %v2112
  %v2114 = vmul.f32 %v2081, 1.442695
  %v2115 = vpow.pop %v2114
  %v2116 = vmul.f32 %v2082, 1.442695
  %v2117 = vpow.pop %v2116
  %v2118 = vmul.f32 %v2083, 1.442695
  %v2119 = vpow.pop %v2118
  %v2120 = vmul.f32 %v2084, 1.442695
  %v2121 = vpow.pop %v2120
  %v2122 = vmul.f32 %v2085, 1.442695
  %v2123 = vpow.pop %v2122
  %2124 = vadd.xlane.f32.xlu0 %v2087
  %v2125 = vpop.xlane.xlu0 %2124
  %2126 = vadd.xlane.f32.xlu0 %v2089
  %v2127 = vpop.xlane.xlu0 %2126
  %2128 = vadd.xlane.f32.xlu0 %v2091
  %v2129 = vpop.xlane.xlu0 %2128
  %2130 = vadd.xlane.f32.xlu0 %v2093
  %v2131 = vpop.xlane.xlu0 %2130
  %2132 = vadd.xlane.f32.xlu0 %v2095
  %v2133 = vpop.xlane.xlu0 %2132
  %2134 = vadd.xlane.f32.xlu0 %v2097
  %v2135 = vpop.xlane.xlu0 %2134
  %2136 = vadd.xlane.f32.xlu0 %v2099
  %v2137 = vpop.xlane.xlu0 %2136
  %2138 = vadd.xlane.f32.xlu0 %v2101
  %v2139 = vpop.xlane.xlu0 %2138
  %2140 = vadd.xlane.f32.xlu0 %v2103
  %v2141 = vpop.xlane.xlu0 %2140
  %2142 = vadd.xlane.f32.xlu0 %v2105
  %v2143 = vpop.xlane.xlu0 %2142
  %2144 = vadd.xlane.f32.xlu0 %v2107
  %v2145 = vpop.xlane.xlu0 %2144
  %2146 = vadd.xlane.f32.xlu0 %v2109
  %v2147 = vpop.xlane.xlu0 %2146
  %2148 = vadd.xlane.f32.xlu0 %v2111
  %v2149 = vpop.xlane.xlu0 %2148
  %2150 = vadd.xlane.f32.xlu0 %v2113
  %v2151 = vpop.xlane.xlu0 %2150
  %2152 = vadd.xlane.f32.xlu0 %v2115
  %v2153 = vpop.xlane.xlu0 %2152
  %2154 = vadd.xlane.f32.xlu0 %v2117
  %v2155 = vpop.xlane.xlu0 %2154
  %2156 = vadd.xlane.f32.xlu0 %v2119
  %v2157 = vpop.xlane.xlu0 %2156
  %2158 = vadd.xlane.f32.xlu0 %v2121
  %v2159 = vpop.xlane.xlu0 %2158
  %2160 = vadd.xlane.f32.xlu0 %v2123
  %v2161 = vpop.xlane.xlu0 %2160
  %v2162 = vrcp.pop %v2125
  %v2163 = vrcp.pop %v2127
  %v2164 = vrcp.pop %v2129
  %v2165 = vrcp.pop %v2131
  %v2166 = vrcp.pop %v2133
  %v2167 = vrcp.pop %v2135
  %v2168 = vrcp.pop %v2137
  %v2169 = vrcp.pop %v2139
  %v2170 = vrcp.pop %v2141
  %v2171 = vrcp.pop %v2143
  %v2172 = vrcp.pop %v2145
  %v2173 = vrcp.pop %v2147
  %v2174 = vrcp.pop %v2149
  %v2175 = vrcp.pop %v2151
  %v2176 = vrcp.pop %v2153
  %v2177 = vrcp.pop %v2155
  %v2178 = vrcp.pop %v2157
  %v2179 = vrcp.pop %v2159
  %v2180 = vrcp.pop %v2161
  %v2181 = vmul.f32 %v2087, %v2162
  %v2182 = vmul.f32 %v2089, %v2163
  %v2183 = vmul.f32 %v2091, %v2164
  %v2184 = vmul.f32 %v2093, %v2165
  %v2185 = vmul.f32 %v2095, %v2166
  %v2186 = vmul.f32 %v2097, %v2167
  %v2187 = vmul.f32 %v2099, %v2168
  %v2188 = vmul.f32 %v2101, %v2169
  %v2189 = vmul.f32 %v2103, %v2170
  %v2190 = vmul.f32 %v2105, %v2171
  %v2191 = vmul.f32 %v2107, %v2172
  %v2192 = vmul.f32 %v2109, %v2173
  %v2193 = vmul.f32 %v2111, %v2174
  %v2194 = vmul.f32 %v2113, %v2175
  %v2195 = vmul.f32 %v2115, %v2176
  %v2196 = vmul.f32 %v2117, %v2177
  %v2197 = vmul.f32 %v2119, %v2178
  %v2198 = vmul.f32 %v2121, %v2179
  %v2199 = vmul.f32 %v2123, %v2180
  %v2200 = vpack.c.bf16 %v2181, %v2181
  %v2201 = vpack.c.bf16 %v2182, %v2182
  %v2202 = vpack.c.bf16 %v2183, %v2183
  %v2203 = vpack.c.bf16 %v2184, %v2184
  %v2204 = vpack.c.bf16 %v2185, %v2185
  %v2205 = vpack.c.bf16 %v2186, %v2186
  %v2206 = vpack.c.bf16 %v2187, %v2187
  %v2207 = vpack.c.bf16 %v2188, %v2188
  %v2208 = vpack.c.bf16 %v2189, %v2189
  %v2209 = vpack.c.bf16 %v2190, %v2190
  %v2210 = vpack.c.bf16 %v2191, %v2191
  %v2211 = vpack.c.bf16 %v2192, %v2192
  %v2212 = vpack.c.bf16 %v2193, %v2193
  %v2213 = vpack.c.bf16 %v2194, %v2194
  %v2214 = vpack.c.bf16 %v2195, %v2195
  %v2215 = vpack.c.bf16 %v2196, %v2196
  %v2216 = vpack.c.bf16 %v2197, %v2197
  %v2217 = vpack.c.bf16 %v2198, %v2198
  %v2218 = vpack.c.bf16 %v2199, %v2199
  %2219 = vst [vmem:[%s9 + $0x4c] sm:$0xf] %v2200
  %2220 = vst [vmem:[%s9 + $0x50] sm:$0xf] %v2201
  %2221 = vst [vmem:[%s9 + $0x54] sm:$0xf] %v2202
  %2222 = vst [vmem:[%s9 + $0x58] sm:$0xf] %v2203
  %2223 = vst [vmem:[%s9 + $0x5c] sm:$0xf] %v2204
  %2224 = vst [vmem:[%s9 + $0x60] sm:$0xf] %v2205
  %2225 = vst [vmem:[%s9 + $0x64] sm:$0xf] %v2206
  %2226 = vst [vmem:[%s9 + $0x68] sm:$0xf] %v2207
  %2227 = vst [vmem:[%s9 + $0x6c] sm:$0xf] %v2208
  %2228 = vst [vmem:[%s9 + $0x70] sm:$0xf] %v2209
  %2229 = vst [vmem:[%s9 + $0x74] sm:$0xf] %v2210
  %2230 = vst [vmem:[%s9 + $0x78] sm:$0xf] %v2211
  %2231 = vst [vmem:[%s9 + $0x7c] sm:$0xf] %v2212
  %2232 = vst [vmem:[%s9 + $0x80] sm:$0xf] %v2213
  %2233 = vst [vmem:[%s9 + $0x84] sm:$0xf] %v2214
  %2234 = vst [vmem:[%s9 + $0x88] sm:$0xf] %v2215
  %2235 = vst [vmem:[%s9 + $0x8c] sm:$0xf] %v2216
  %2236 = vst [vmem:[%s9 + $0x90] sm:$0xf] %v2217
  %2237 = vst [vmem:[%s9 + $0x94] sm:$0xf] %v2218
  // Predicated region
  $region38: #{fcn_for_encoder.1} parent=0 // pred_check
    _
  $region39: #{fcn_for_encoder.1} parent=0 // pred_check_branch
    %2239 = sbr.rel (0) target = $region41
  $region40: #{fcn_for_encoder.1} parent=0 // pred_region
    _
  $region41: #{fcn_for_encoder.1} parent=0 // pred_fallthru
    _
  // Predicated region
  $region42: #{fcn_for_encoder.1} parent=0 // pred_check
    _
  $region43: #{fcn_for_encoder.1} parent=0 // pred_check_branch
    %2241 = sbr.rel (0) target = $region45
  $region44: #{fcn_for_encoder.1} parent=0 // pred_region
    _
  $region45: #{fcn_for_encoder.1} parent=0 // pred_fallthru
    _

</llo_original>
